<compile_context>
chip_gen: v7x
topology: tpu7x:2x2x1
jax: 0.10.0
libtpu: 0.0.40
codegen_flags: <defaults>
</compile_context>

<pallas_src>
import functools
import math

import jax
import jax.numpy as jnp
import numpy as np
from jax.experimental import pallas as pl
from jax.experimental.pallas import tpu as pltpu


# --------------------------------------------------------------------------- helpers
def _round_up(x, m):
    return ((x + m - 1) // m) * m


def _pick_m_tile(m, l_seg, target=1024):
    """Tile along flattened M=B*L that is a multiple of both 128 (lane tile) and
    l_seg (per-sample length), so roll-based taps never cross a tile boundary into
    a different sample.  Returns (TM, M_pad) with M_pad % TM == 0."""
    base = l_seg * 128 // math.gcd(l_seg, 128)          # lcm(l_seg, 128)
    n_base = max(1, -(-m // base))                      # ceil(m / base)
    mult = max(1, min(target // base, n_base))
    tm = base * mult
    m_pad = _round_up(max(m, tm), tm)
    return tm, m_pad


def _edge_masks(m_pad, l_seg):
    """Per-lane masks (1, M_pad): left-neighbour / right-neighbour in-bounds within
    each length-l_seg sample of the flattened M axis (implements conv zero padding
    and blocks cross-sample / cross-tile leakage through pltpu.roll)."""
    pos = jnp.arange(m_pad, dtype=jnp.int32) % l_seg
    ml = (pos > 0).astype(jnp.float32).reshape(1, m_pad)
    mr = (pos < l_seg - 1).astype(jnp.float32).reshape(1, m_pad)
    return ml, mr


# --------------------------------------------------------------------------- stem kernel
def _make_stem_kernel(class_ids, relu):
    """Strided conv as <=3 lane-dense matmuls over phase-stacked activations.

    x_ref   : (stride*C_in, TM)  polyphase activations (phase-major rows)
    w_ref   : (n_cls, C_out, stride*C_in)  per-shift-class weights (zero-padded cols)
    classes : 'left'  -> taps needing x(j-1)  (masked roll +1)
              'mid'   -> taps needing x(j)
              'right' -> taps needing x(j+1)  (masked roll TM-1)
    """
    i_left = class_ids.get("left")
    i_mid = class_ids.get("mid")
    i_right = class_ids.get("right")

    def kernel(x_ref, w_ref, b_ref, ml_ref, mr_ref, o_ref):
        x = x_ref[...]                                   # (s*C_in, TM) f32
        tm = x.shape[1]
        y = jnp.dot(w_ref[i_mid], x, preferred_element_type=jnp.float32)
        if i_left is not None:
            xl = pltpu.roll(x, shift=1, axis=1) * ml_ref[...]
            y = y + jnp.dot(w_ref[i_left], xl, preferred_element_type=jnp.float32)
        if i_right is not None:
            xr = pltpu.roll(x, shift=tm - 1, axis=1) * mr_ref[...]
            y = y + jnp.dot(w_ref[i_right], xr, preferred_element_type=jnp.float32)
        y = y + b_ref[...]
        if relu:
            y = jnp.maximum(y, 0.0)
        o_ref[...] = y.astype(o_ref.dtype)

    return kernel


def conv_strided(x_cbl, w, b, *, stride, relu=True):
    """Strided Conv1d (+bias, optional ReLU), channel-first (C_in,B,L)->(C_out,B,L_out).

    Polyphase decomposition (1x data reshuffle, no KxC_in im2col duplication); the K
    taps become per-shift-class matmuls with roll + edge masks implementing the
    zero padding, lane-dense over flattened M = B*L_out."""
    C_in, B, L = x_cbl.shape
    C_out, _, K = w.shape
    pad = 1
    L_out = (L + 2 * pad - K) // stride + 1
    if stride == 2:
        assert L % 2 == 0, "stride-2 stem conv expects an even input length"
    M = B * L_out
    TM, M_pad = _pick_m_tile(M, L_out)

    # phase split: phase p = x[.., p::stride], truncated / zero-padded to L_out
    x32 = x_cbl.astype(jnp.float32)
    phases = []
    for p in range(stride):
        ph = x32[:, :, p::stride][:, :, :L_out]
        if ph.shape[-1] < L_out:
            ph = jnp.pad(ph, ((0, 0), (0, 0), (0, L_out - ph.shape[-1])))
        phases.append(ph)
    xph = jnp.concatenate(phases, axis=0).reshape(stride * C_in, M)
    xph = jnp.pad(xph, ((0, 0), (0, M_pad - M)))

    # group taps by their within-sample shift class q in {-1, 0, +1}
    classes = {}
    for k in range(K):
        t = k - pad
        p = t % stride
        q = (t - p) // stride
        assert -1 <= q <= 1
        classes.setdefault(q, []).append((p, k))

    def class_weight(taps):
        cols = []
        for p in range(stride):
            w_p = None
            for (pp, kk) in taps:
                if pp == p:
                    w_p = w[:, :, kk]
            cols.append(w_p if w_p is not None
                        else jnp.zeros((C_out, C_in), w.dtype))
        return jnp.concatenate(cols, axis=1)              # (C_out, stride*C_in)

    order = [q for q in (-1, 0, 1) if q in classes]
    w_stack = jnp.stack([class_weight(classes[q]) for q in order]
                        ).astype(jnp.float32)             # (n_cls, C_out, s*C_in)
    name = {-1: "left", 0: "mid", 1: "right"}
    class_ids = {name[q]: i for i, q in enumerate(order)}

    b_col = b.reshape(C_out, 1).astype(jnp.float32)
    ml, mr = _edge_masks(M_pad, L_out)
    sc = stride * C_in
    n_cls = len(order)

    out = pl.pallas_call(
        _make_stem_kernel(class_ids, relu),
        out_shape=jax.ShapeDtypeStruct((C_out, M_pad), jnp.float32),
        grid_spec=pltpu.PrefetchScalarGridSpec(
            num_scalar_prefetch=0,
            grid=(M_pad // TM,),
            in_specs=[
                pl.BlockSpec((sc, TM), lambda i: (0, i)),            # activations
                pl.BlockSpec((n_cls, C_out, sc), lambda i: (0, 0, 0)),  # weights
                pl.BlockSpec((C_out, 1), lambda i: (0, 0)),          # bias
                pl.BlockSpec((1, TM), lambda i: (0, i)),             # left-edge mask
                pl.BlockSpec((1, TM), lambda i: (0, i)),             # right-edge mask
            ],
            out_specs=pl.BlockSpec((C_out, TM), lambda i: (0, i)),
        ),
        compiler_params=pltpu.CompilerParams(
            dimension_semantics=("parallel",),
            vmem_limit_bytes=32 * 1024 * 1024,
        ),
    )(xph, w_stack, b_col, ml, mr)
    return out[:, :M].reshape(C_out, B, L_out)


# --------------------------------------------------------------------------- fused tail
def _make_tail_kernel(num_res_layers):
    """Fused: head conv3(+bias) -> ResidualStack -> ReLU -> pre_vq 1x1(+bias)."""
    R = num_res_layers

    def kernel(*refs):
        if R > 0:
            (x_ref, wh_ref, bh_ref, ml_ref, mr_ref,
             w3s_ref, w1s_ref, wp_ref, bp_ref, o_ref) = refs
        else:
            x_ref, wh_ref, bh_ref, ml_ref, mr_ref, wp_ref, bp_ref, o_ref = refs

        ml = ml_ref[...]                                  # (1, TM)
        mr = mr_ref[...]
        tm = x_ref.shape[1]

        def conv3(v, w_cat):
            # k=3 / s=1 / p=1 conv as ONE dot: taps [x(j-1); x(j); x(j+1)] stacked
            # along the contraction axis; roll + edge mask = zero padding.
            vl = pltpu.roll(v, shift=1, axis=1) * ml
            vr = pltpu.roll(v, shift=tm - 1, axis=1) * mr
            taps = jnp.concatenate([vl, v, vr], axis=0)   # (3*C_in, TM)
            return jnp.dot(w_cat, taps, preferred_element_type=jnp.float32)

        # head conv (conv_3 / conv_4): bias, no activation
        x = conv3(x_ref[...], wh_ref[...]) + bh_ref[...]

        # residual stack: x = x + conv1x1( relu( conv3( relu(x) ) ) )   (no biases)
        for l in range(R):
            h = jnp.maximum(x, 0.0)
            h = conv3(h, w3s_ref[l])
            h = jnp.maximum(h, 0.0)
            x = x + jnp.dot(w1s_ref[l], h, preferred_element_type=jnp.float32)

        # final ReLU of the residual stack, then pre-VQ 1x1 conv
        x = jnp.maximum(x, 0.0)
        y = jnp.dot(wp_ref[...], x, preferred_element_type=jnp.float32) + bp_ref[...]
        o_ref[...] = y.astype(o_ref.dtype)

    return kernel


def fused_tail(x_cbl, head_wb, res_params, prevq_wb):
    """One pallas_call: conv_3/conv_4 -> ResidualStack -> ReLU -> pre_vq_conv.

    Batch is flattened onto the lane axis (M = B*L): lane-dense stores, every weight
    and every intermediate activation resident in VMEM for the whole call.
    Returns (B, E, L) in PyTorch NCL layout."""
    NH, B, L = x_cbl.shape
    w_head, b_head = head_wb
    w_pre, b_pre = prevq_wb
    R = len(res_params)
    E = w_pre.shape[0]

    M = B * L
    TM, M_pad = _pick_m_tile(M, L)

    x = x_cbl.astype(jnp.float32).reshape(NH, M)
    x = jnp.pad(x, ((0, 0), (0, M_pad - M)))

    def cat3(w3):  # (C_out, C_in, 3) -> (C_out, 3*C_in), tap-major columns
        return jnp.concatenate([w3[:, :, k] for k in range(3)], axis=1)

    wh = cat3(w_head).astype(jnp.float32)                 # (NH, 3*NH)
    bh = b_head.reshape(NH, 1).astype(jnp.float32)
    wp = w_pre[:, :, 0].astype(jnp.float32)               # (E, NH)
    bp = b_pre.reshape(E, 1).astype(jnp.float32)
    ml, mr = _edge_masks(M_pad, L)

    args = [x, wh, bh, ml, mr]
    in_specs = [
        pl.BlockSpec((NH, TM), lambda i: (0, i)),
        pl.BlockSpec((NH, 3 * NH), lambda i: (0, 0)),
        pl.BlockSpec((NH, 1), lambda i: (0, 0)),
        pl.BlockSpec((1, TM), lambda i: (0, i)),
        pl.BlockSpec((1, TM), lambda i: (0, i)),
    ]
    if R > 0:
        RH = res_params[0][0].shape[0]
        w3s = jnp.stack([cat3(w3) for (w3, _) in res_params]).astype(jnp.float32)
        w1s = jnp.stack([w1[:, :, 0] for (_, w1) in res_params]).astype(jnp.float32)
        args += [w3s, w1s]
        in_specs += [
            pl.BlockSpec((R, RH, 3 * NH), lambda i: (0, 0, 0)),
            pl.BlockSpec((R, NH, RH), lambda i: (0, 0, 0)),
        ]
    args += [wp, bp]
    in_specs += [
        pl.BlockSpec((E, NH), lambda i: (0, 0)),
        pl.BlockSpec((E, 1), lambda i: (0, 0)),
    ]

    out = pl.pallas_call(
        _make_tail_kernel(R),
        out_shape=jax.ShapeDtypeStruct((E, M_pad), jnp.float32),
        grid_spec=pltpu.PrefetchScalarGridSpec(
            num_scalar_prefetch=0,
            grid=(M_pad // TM,),
            in_specs=in_specs,
            out_specs=pl.BlockSpec((E, TM), lambda i: (0, i)),
        ),
        compiler_params=pltpu.CompilerParams(
            dimension_semantics=("parallel",),
            vmem_limit_bytes=32 * 1024 * 1024,
        ),
    )(*args)
    return out[:, :M].reshape(E, B, L).transpose(1, 0, 2)


# --------------------------------------------------------------------------- params
def _init_conv(key, c_out, c_in, k, bias=True):
    # deterministic, PyTorch-like uniform(-1/sqrt(fan_in), 1/sqrt(fan_in))
    kw, kb = jax.random.split(key)
    bound = 1.0 / float(np.sqrt(c_in * k))
    w = jax.random.uniform(kw, (c_out, c_in, k), jnp.float32, -bound, bound)
    b = jax.random.uniform(kb, (c_out,), jnp.float32, -bound, bound) if bias else None
    return w, b


def init_encoder_params(key, in_channels, num_hiddens, num_residual_layers,
                        num_residual_hiddens, embedding_dim, compression_factor):
    assert compression_factor in (4, 8, 12, 16)
    keys = jax.random.split(key, 3 + 2 * num_residual_layers + 3)
    p = {}
    p["conv_1"] = _init_conv(keys[0], num_hiddens // 2, in_channels, 4)
    p["conv_2"] = _init_conv(keys[1], num_hiddens, num_hiddens // 2, 4)
    p["pre_vq"] = _init_conv(keys[2], embedding_dim, num_hiddens, 1)
    res = []
    for i in range(num_residual_layers):
        w3, _ = _init_conv(keys[3 + i], num_residual_hiddens, num_hiddens, 3, bias=False)
        w1, _ = _init_conv(keys[3 + num_residual_layers + i],
                           num_hiddens, num_residual_hiddens, 1, bias=False)
        res.append((w3, w1))
    p["res"] = res
    kc = keys[3 + 2 * num_residual_layers:]
    if compression_factor == 4:
        p["conv_3"] = _init_conv(kc[0], num_hiddens, num_hiddens, 3)
    elif compression_factor == 8:
        p["conv_A"] = _init_conv(kc[0], num_hiddens, num_hiddens, 4)
        p["conv_3"] = _init_conv(kc[1], num_hiddens, num_hiddens, 3)
    elif compression_factor == 12:
        p["conv_3"] = _init_conv(kc[0], num_hiddens, num_hiddens, 4)
        p["conv_4"] = _init_conv(kc[1], num_hiddens, num_hiddens, 3)
    elif compression_factor == 16:
        p["conv_A"] = _init_conv(kc[0], num_hiddens, num_hiddens, 4)
        p["conv_B"] = _init_conv(kc[1], num_hiddens, num_hiddens, 4)
        p["conv_3"] = _init_conv(kc[2], num_hiddens, num_hiddens, 3)
    return p


# --------------------------------------------------------------------------- forward
def encoder_forward(params, inputs, compression_factor):
    """Mirrors Encoder.forward; activations travel channel-first (C, B, L)."""
    B = inputs.shape[0]
    L = inputs.shape[-1]
    x = inputs.astype(jnp.float32).reshape(1, B, L)       # channel dim is 1 -> free

    w, b = params["conv_1"]
    x = conv_strided(x, w, b, stride=2)                    # fused ReLU
    w, b = params["conv_2"]
    x = conv_strided(x, w, b, stride=2)                    # fused ReLU

    if compression_factor == 4:
        head = params["conv_3"]
    elif compression_factor == 8:
        w, b = params["conv_A"]
        x = conv_strided(x, w, b, stride=2)
        head = params["conv_3"]
    elif compression_factor == 12:
        w, b = params["conv_3"]
        x = conv_strided(x, w, b, stride=3)
        head = params["conv_4"]
    else:  # 16
        w, b = params["conv_A"]
        x = conv_strided(x, w, b, stride=2)
        w, b = params["conv_B"]
        x = conv_strided(x, w, b, stride=2)
        head = params["conv_3"]

    # conv_3/conv_4 + ResidualStack + final ReLU + pre_vq in a single fused pallas_call
    return fused_tail(x, head, params["res"], params["pre_vq"])


# --------------------------------------------------------------------------- numpy reference
def _np_conv1d(x, w, b, stride, padding):
    x = np.asarray(x, np.float64)
    w = np.asarray(w, np.float64)
    B, C_in, L = x.shape
    C_out, _, K = w.shape
    L_out = (L + 2 * padding - K) // stride + 1
    xp = np.zeros((B, C_in, L + 2 * padding), np.float64)
    xp[:, :, padding:padding + L] = x
    out = np.zeros((B, C_out, L_out), np.float64)
    for j in range(L_out):
        seg = xp[:, :, j * stride:j * stride + K]
        out[:, :, j] = np.einsum("bck,ock->bo", seg, w)
    if b is not None:
        out = out + np.asarray(b, np.float64).reshape(1, C_out, 1)
    return out


def _np_encoder_forward(params, inputs, cf):
    relu = lambda a: np.maximum(a, 0.0)
    x = np.asarray(inputs, np.float64).reshape(inputs.shape[0], 1, inputs.shape[-1])
    w, b = params["conv_1"]; x = relu(_np_conv1d(x, w, b, 2, 1))
    w, b = params["conv_2"]; x = relu(_np_conv1d(x, w, b, 2, 1))
    if cf == 4:
        w, b = params["conv_3"]; x = _np_conv1d(x, w, b, 1, 1)
    elif cf == 8:
        w, b = params["conv_A"]; x = relu(_np_conv1d(x, w, b, 2, 1))
        w, b = params["conv_3"]; x = _np_conv1d(x, w, b, 1, 1)
    elif cf == 12:
        w, b = params["conv_3"]; x = relu(_np_conv1d(x, w, b, 3, 1))
        w, b = params["conv_4"]; x = _np_conv1d(x, w, b, 1, 1)
    else:
        w, b = params["conv_A"]; x = relu(_np_conv1d(x, w, b, 2, 1))
        w, b = params["conv_B"]; x = relu(_np_conv1d(x, w, b, 2, 1))
        w, b = params["conv_3"]; x = _np_conv1d(x, w, b, 1, 1)
    for w3, w1 in params["res"]:
        h = relu(_np_conv1d(relu(x), w3, None, 1, 1))
        x = x + _np_conv1d(h, w1, None, 1, 0)
    x = relu(x)
    w, b = params["pre_vq"]
    return _np_conv1d(x, w, b, 1, 0)


# --------------------------------------------------------------------------- main
if __name__ == "__main__":
    key = jax.random.PRNGKey(0)
    k_param, k_in = jax.random.split(key)

    B, L = 2, 64
    in_channels = 1                 # forward views the input as (B, 1, L)
    num_hiddens = 32
    num_residual_layers = 2
    num_residual_hiddens = 16
    embedding_dim = 16

    inputs = jax.random.normal(k_in, (B, L), dtype=jnp.float32)

    # exercise every compression-factor branch against a float64 numpy reference
    for cf in (4, 8, 12, 16):
        params = init_encoder_params(k_param, in_channels, num_hiddens,
                                     num_residual_layers, num_residual_hiddens,
                                     embedding_dim, cf)
        fwd = jax.jit(functools.partial(encoder_forward, compression_factor=cf))
        out = jax.block_until_ready(fwd(params, inputs))

        expected_shape = (B, embedding_dim, L // cf)
        assert out.shape == expected_shape, (cf, out.shape, expected_shape)
        assert bool(jnp.all(jnp.isfinite(out)))

        ref = _np_encoder_forward(params, inputs, cf)
        err = float(np.max(np.abs(np.asarray(out) - ref)))
        assert np.allclose(np.asarray(out), ref, rtol=1e-3, atol=1e-3), (
            cf, "max abs err", err)

    print("KERNEL_OK")
</pallas_src>

<mosaic_0001>
module attributes {stable_mosaic.version = 11 : i64} {
  func.func @kernel(%arg0: i32, %arg1: memref<2x128xf32, #tpu.memory_space<vmem>>, %arg2: memref<3x16x2xf32, #tpu.memory_space<vmem>>, %arg3: memref<16x1xf32, #tpu.memory_space<vmem>>, %arg4: memref<1x128xf32, #tpu.memory_space<vmem>>, %arg5: memref<1x128xf32, #tpu.memory_space<vmem>>, %arg6: memref<16x128xf32, #tpu.memory_space<vmem>>) attributes {dimension_semantics = [#tpu.dimension_semantics<parallel>], iteration_bounds = array<i64: 1>, scalar_prefetch = 0 : i64, scratch_operands = 0 : i64, tpu.core_type = #tpu.core_type<tc>, window_params = [{transform_indices = @transform_0, window_bounds = array<i64: 2, 128>}, {pipeline_mode = #tpu.pipeline_mode<synchronous>, transform_indices = @transform_1, window_bounds = array<i64: 3, 16, 2>}, {pipeline_mode = #tpu.pipeline_mode<synchronous>, transform_indices = @transform_2, window_bounds = array<i64: 16, 1>}, {transform_indices = @transform_3, window_bounds = array<i64: 1, 128>}, {transform_indices = @transform_4, window_bounds = array<i64: 1, 128>}, {transform_indices = @transform_5, window_bounds = array<i64: 16, 128>}]} {
    %c0 = arith.constant 0 : index
    %c0_0 = arith.constant 0 : index
    %0 = vector.load %arg1[%c0, %c0_0] : memref<2x128xf32, #tpu.memory_space<vmem>>, vector<2x128xf32>
    %c1 = arith.constant 1 : index
    %c0_1 = arith.constant 0 : index
    %c0_2 = arith.constant 0 : index
    %1 = vector.load %arg2[%c1, %c0_1, %c0_2] : memref<3x16x2xf32, #tpu.memory_space<vmem>>, vector<1x16x2xf32>
    %2 = vector.shape_cast %1 : vector<1x16x2xf32> to vector<16x2xf32>
    %cst = arith.constant dense<0.000000e+00> : vector<16x128xf32>
    %3 = tpu.matmul %2, %0, %cst {dimension_numbers = #tpu.dot_dimension_numbers<[1], [0], [0], [1], [0, 0, 1, 1], [], []>} : vector<16x2xf32>, vector<2x128xf32>, vector<16x128xf32> -> vector<16x128xf32>
    %c1_i32 = arith.constant 1 : i32
    %4 = tpu.dynamic_rotate %0 by %c1_i32 dim 1 : vector<2x128xf32>, i32 -> vector<2x128xf32>
    %c0_3 = arith.constant 0 : index
    %c0_4 = arith.constant 0 : index
    %5 = vector.load %arg4[%c0_3, %c0_4] : memref<1x128xf32, #tpu.memory_space<vmem>>, vector<1x128xf32>
    %6 = vector.broadcast %5 : vector<1x128xf32> to vector<2x128xf32>
    %7 = arith.mulf %4, %6 : vector<2x128xf32>
    %c0_5 = arith.constant 0 : index
    %c0_6 = arith.constant 0 : index
    %c0_7 = arith.constant 0 : index
    %8 = vector.load %arg2[%c0_5, %c0_6, %c0_7] : memref<3x16x2xf32, #tpu.memory_space<vmem>>, vector<1x16x2xf32>
    %9 = vector.shape_cast %8 : vector<1x16x2xf32> to vector<16x2xf32>
    %cst_8 = arith.constant dense<0.000000e+00> : vector<16x128xf32>
    %10 = tpu.matmul %9, %7, %cst_8 {dimension_numbers = #tpu.dot_dimension_numbers<[1], [0], [0], [1], [0, 0, 1, 1], [], []>} : vector<16x2xf32>, vector<2x128xf32>, vector<16x128xf32> -> vector<16x128xf32>
    %11 = arith.addf %3, %10 : vector<16x128xf32>
    %c127_i32 = arith.constant 127 : i32
    %12 = tpu.dynamic_rotate %0 by %c127_i32 dim 1 : vector<2x128xf32>, i32 -> vector<2x128xf32>
    %c0_9 = arith.constant 0 : index
    %c0_10 = arith.constant 0 : index
    %13 = vector.load %arg5[%c0_9, %c0_10] : memref<1x128xf32, #tpu.memory_space<vmem>>, vector<1x128xf32>
    %14 = vector.broadcast %13 : vector<1x128xf32> to vector<2x128xf32>
    %15 = arith.mulf %12, %14 : vector<2x128xf32>
    %c2 = arith.constant 2 : index
    %c0_11 = arith.constant 0 : index
    %c0_12 = arith.constant 0 : index
    %16 = vector.load %arg2[%c2, %c0_11, %c0_12] : memref<3x16x2xf32, #tpu.memory_space<vmem>>, vector<1x16x2xf32>
    %17 = vector.shape_cast %16 : vector<1x16x2xf32> to vector<16x2xf32>
    %cst_13 = arith.constant dense<0.000000e+00> : vector<16x128xf32>
    %18 = tpu.matmul %17, %15, %cst_13 {dimension_numbers = #tpu.dot_dimension_numbers<[1], [0], [0], [1], [0, 0, 1, 1], [], []>} : vector<16x2xf32>, vector<2x128xf32>, vector<16x128xf32> -> vector<16x128xf32>
    %19 = arith.addf %11, %18 : vector<16x128xf32>
    %c0_14 = arith.constant 0 : index
    %c0_15 = arith.constant 0 : index
    %20 = vector.load %arg3[%c0_14, %c0_15] : memref<16x1xf32, #tpu.memory_space<vmem>>, vector<16x1xf32>
    %21 = vector.broadcast %20 : vector<16x1xf32> to vector<16x128xf32>
    %22 = arith.addf %19, %21 : vector<16x128xf32>
    %cst_16 = arith.constant 0.000000e+00 : f32
    %23 = vector.broadcast %cst_16 : f32 to vector<16x128xf32>
    %24 = arith.maximumf %22, %23 : vector<16x128xf32>
    %c0_17 = arith.constant 0 : index
    %c0_18 = arith.constant 0 : index
    %25 = vector.load %arg6[%c0_17, %c0_18] : memref<16x128xf32, #tpu.memory_space<vmem>>, vector<16x128xf32>
    tpu.vector_store %arg6[%c0_17, %c0_18], %24 {strides = array<i32>} : memref<16x128xf32, #tpu.memory_space<vmem>>, vector<16x128xf32>,
    return
  }
  func.func @transform_0(%arg0: i32) -> (i32, i32) {
    %c0_i32 = arith.constant 0 : i32
    %c0_i32_0 = arith.constant 0 : i32
    return %c0_i32, %arg0 : i32, i32
  }
  func.func @transform_1(%arg0: i32) -> (i32, i32, i32) {
    %c0_i32 = arith.constant 0 : i32
    %c0_i32_0 = arith.constant 0 : i32
    %c0_i32_1 = arith.constant 0 : i32
    %c0_i32_2 = arith.constant 0 : i32
    return %c0_i32, %c0_i32_0, %c0_i32_1 : i32, i32, i32
  }
  func.func @transform_2(%arg0: i32) -> (i32, i32) {
    %c0_i32 = arith.constant 0 : i32
    %c0_i32_0 = arith.constant 0 : i32
    %c0_i32_1 = arith.constant 0 : i32
    return %c0_i32, %c0_i32_0 : i32, i32
  }
  func.func @transform_3(%arg0: i32) -> (i32, i32) {
    %c0_i32 = arith.constant 0 : i32
    %c0_i32_0 = arith.constant 0 : i32
    return %c0_i32, %arg0 : i32, i32
  }
  func.func @transform_4(%arg0: i32) -> (i32, i32) {
    %c0_i32 = arith.constant 0 : i32
    %c0_i32_0 = arith.constant 0 : i32
    return %c0_i32, %arg0 : i32, i32
  }
  func.func @transform_5(%arg0: i32) -> (i32, i32) {
    %c0_i32 = arith.constant 0 : i32
    %c0_i32_0 = arith.constant 0 : i32
    return %c0_i32, %arg0 : i32, i32
  }
}

module attributes {stable_mosaic.version = 11 : i64} {
  func.func @kernel(%arg0: i32, %arg1: memref<32x128xf32, #tpu.memory_space<vmem>>, %arg2: memref<3x32x32xf32, #tpu.memory_space<vmem>>, %arg3: memref<32x1xf32, #tpu.memory_space<vmem>>, %arg4: memref<1x128xf32, #tpu.memory_space<vmem>>, %arg5: memref<1x128xf32, #tpu.memory_space<vmem>>, %arg6: memref<32x128xf32, #tpu.memory_space<vmem>>) attributes {dimension_semantics = [#tpu.dimension_semantics<parallel>], iteration_bounds = array<i64: 1>, scalar_prefetch = 0 : i64, scratch_operands = 0 : i64, tpu.core_type = #tpu.core_type<tc>, window_params = [{transform_indices = @transform_0, window_bounds = array<i64: 32, 128>}, {pipeline_mode = #tpu.pipeline_mode<synchronous>, transform_indices = @transform_1, window_bounds = array<i64: 3, 32, 32>}, {pipeline_mode = #tpu.pipeline_mode<synchronous>, transform_indices = @transform_2, window_bounds = array<i64: 32, 1>}, {transform_indices = @transform_3, window_bounds = array<i64: 1, 128>}, {transform_indices = @transform_4, window_bounds = array<i64: 1, 128>}, {transform_indices = @transform_5, window_bounds = array<i64: 32, 128>}]} {
    %c0 = arith.constant 0 : index
    %c0_0 = arith.constant 0 : index
    %0 = vector.load %arg1[%c0, %c0_0] : memref<32x128xf32, #tpu.memory_space<vmem>>, vector<32x128xf32>
    %c1 = arith.constant 1 : index
    %c0_1 = arith.constant 0 : index
    %c0_2 = arith.constant 0 : index
    %1 = vector.load %arg2[%c1, %c0_1, %c0_2] : memref<3x32x32xf32, #tpu.memory_space<vmem>>, vector<1x32x32xf32>
    %2 = vector.shape_cast %1 : vector<1x32x32xf32> to vector<32x32xf32>
    %cst = arith.constant dense<0.000000e+00> : vector<32x128xf32>
    %3 = tpu.matmul %2, %0, %cst {dimension_numbers = #tpu.dot_dimension_numbers<[1], [0], [0], [1], [0, 0, 1, 1], [], []>} : vector<32x32xf32>, vector<32x128xf32>, vector<32x128xf32> -> vector<32x128xf32>
    %c1_i32 = arith.constant 1 : i32
    %4 = tpu.dynamic_rotate %0 by %c1_i32 dim 1 : vector<32x128xf32>, i32 -> vector<32x128xf32>
    %c0_3 = arith.constant 0 : index
    %c0_4 = arith.constant 0 : index
    %5 = vector.load %arg4[%c0_3, %c0_4] : memref<1x128xf32, #tpu.memory_space<vmem>>, vector<1x128xf32>
    %6 = vector.broadcast %5 : vector<1x128xf32> to vector<32x128xf32>
    %7 = arith.mulf %4, %6 : vector<32x128xf32>
    %c0_5 = arith.constant 0 : index
    %c0_6 = arith.constant 0 : index
    %c0_7 = arith.constant 0 : index
    %8 = vector.load %arg2[%c0_5, %c0_6, %c0_7] : memref<3x32x32xf32, #tpu.memory_space<vmem>>, vector<1x32x32xf32>
    %9 = vector.shape_cast %8 : vector<1x32x32xf32> to vector<32x32xf32>
    %cst_8 = arith.constant dense<0.000000e+00> : vector<32x128xf32>
    %10 = tpu.matmul %9, %7, %cst_8 {dimension_numbers = #tpu.dot_dimension_numbers<[1], [0], [0], [1], [0, 0, 1, 1], [], []>} : vector<32x32xf32>, vector<32x128xf32>, vector<32x128xf32> -> vector<32x128xf32>
    %11 = arith.addf %3, %10 : vector<32x128xf32>
    %c127_i32 = arith.constant 127 : i32
    %12 = tpu.dynamic_rotate %0 by %c127_i32 dim 1 : vector<32x128xf32>, i32 -> vector<32x128xf32>
    %c0_9 = arith.constant 0 : index
    %c0_10 = arith.constant 0 : index
    %13 = vector.load %arg5[%c0_9, %c0_10] : memref<1x128xf32, #tpu.memory_space<vmem>>, vector<1x128xf32>
    %14 = vector.broadcast %13 : vector<1x128xf32> to vector<32x128xf32>
    %15 = arith.mulf %12, %14 : vector<32x128xf32>
    %c2 = arith.constant 2 : index
    %c0_11 = arith.constant 0 : index
    %c0_12 = arith.constant 0 : index
    %16 = vector.load %arg2[%c2, %c0_11, %c0_12] : memref<3x32x32xf32, #tpu.memory_space<vmem>>, vector<1x32x32xf32>
    %17 = vector.shape_cast %16 : vector<1x32x32xf32> to vector<32x32xf32>
    %cst_13 = arith.constant dense<0.000000e+00> : vector<32x128xf32>
    %18 = tpu.matmul %17, %15, %cst_13 {dimension_numbers = #tpu.dot_dimension_numbers<[1], [0], [0], [1], [0, 0, 1, 1], [], []>} : vector<32x32xf32>, vector<32x128xf32>, vector<32x128xf32> -> vector<32x128xf32>
    %19 = arith.addf %11, %18 : vector<32x128xf32>
    %c0_14 = arith.constant 0 : index
    %c0_15 = arith.constant 0 : index
    %20 = vector.load %arg3[%c0_14, %c0_15] : memref<32x1xf32, #tpu.memory_space<vmem>>, vector<32x1xf32>
    %21 = vector.broadcast %20 : vector<32x1xf32> to vector<32x128xf32>
    %22 = arith.addf %19, %21 : vector<32x128xf32>
    %cst_16 = arith.constant 0.000000e+00 : f32
    %23 = vector.broadcast %cst_16 : f32 to vector<32x128xf32>
    %24 = arith.maximumf %22, %23 : vector<32x128xf32>
    %c0_17 = arith.constant 0 : index
    %c0_18 = arith.constant 0 : index
    %25 = vector.load %arg6[%c0_17, %c0_18] : memref<32x128xf32, #tpu.memory_space<vmem>>, vector<32x128xf32>
    tpu.vector_store %arg6[%c0_17, %c0_18], %24 {strides = array<i32>} : memref<32x128xf32, #tpu.memory_space<vmem>>, vector<32x128xf32>,
    return
  }
  func.func @transform_0(%arg0: i32) -> (i32, i32) {
    %c0_i32 = arith.constant 0 : i32
    %c0_i32_0 = arith.constant 0 : i32
    return %c0_i32, %arg0 : i32, i32
  }
  func.func @transform_1(%arg0: i32) -> (i32, i32, i32) {
    %c0_i32 = arith.constant 0 : i32
    %c0_i32_0 = arith.constant 0 : i32
    %c0_i32_1 = arith.constant 0 : i32
    %c0_i32_2 = arith.constant 0 : i32
    return %c0_i32, %c0_i32_0, %c0_i32_1 : i32, i32, i32
  }
  func.func @transform_2(%arg0: i32) -> (i32, i32) {
    %c0_i32 = arith.constant 0 : i32
    %c0_i32_0 = arith.constant 0 : i32
    %c0_i32_1 = arith.constant 0 : i32
    return %c0_i32, %c0_i32_0 : i32, i32
  }
  func.func @transform_3(%arg0: i32) -> (i32, i32) {
    %c0_i32 = arith.constant 0 : i32
    %c0_i32_0 = arith.constant 0 : i32
    return %c0_i32, %arg0 : i32, i32
  }
  func.func @transform_4(%arg0: i32) -> (i32, i32) {
    %c0_i32 = arith.constant 0 : i32
    %c0_i32_0 = arith.constant 0 : i32
    return %c0_i32, %arg0 : i32, i32
  }
  func.func @transform_5(%arg0: i32) -> (i32, i32) {
    %c0_i32 = arith.constant 0 : i32
    %c0_i32_0 = arith.constant 0 : i32
    return %c0_i32, %arg0 : i32, i32
  }
}

module attributes {stable_mosaic.version = 11 : i64} {
  func.func @kernel(%arg0: i32, %arg1: memref<32x128xf32, #tpu.memory_space<vmem>>, %arg2: memref<32x96xf32, #tpu.memory_space<vmem>>, %arg3: memref<32x1xf32, #tpu.memory_space<vmem>>, %arg4: memref<1x128xf32, #tpu.memory_space<vmem>>, %arg5: memref<1x128xf32, #tpu.memory_space<vmem>>, %arg6: memref<2x16x96xf32, #tpu.memory_space<vmem>>, %arg7: memref<2x32x16xf32, #tpu.memory_space<vmem>>, %arg8: memref<16x32xf32, #tpu.memory_space<vmem>>, %arg9: memref<16x1xf32, #tpu.memory_space<vmem>>, %arg10: memref<16x128xf32, #tpu.memory_space<vmem>>) attributes {dimension_semantics = [#tpu.dimension_semantics<parallel>], iteration_bounds = array<i64: 1>, scalar_prefetch = 0 : i64, scratch_operands = 0 : i64, tpu.core_type = #tpu.core_type<tc>, window_params = [{transform_indices = @transform_0, window_bounds = array<i64: 32, 128>}, {pipeline_mode = #tpu.pipeline_mode<synchronous>, transform_indices = @transform_1, window_bounds = array<i64: 32, 96>}, {pipeline_mode = #tpu.pipeline_mode<synchronous>, transform_indices = @transform_2, window_bounds = array<i64: 32, 1>}, {transform_indices = @transform_3, window_bounds = array<i64: 1, 128>}, {transform_indices = @transform_4, window_bounds = array<i64: 1, 128>}, {pipeline_mode = #tpu.pipeline_mode<synchronous>, transform_indices = @transform_5, window_bounds = array<i64: 2, 16, 96>}, {pipeline_mode = #tpu.pipeline_mode<synchronous>, transform_indices = @transform_6, window_bounds = array<i64: 2, 32, 16>}, {pipeline_mode = #tpu.pipeline_mode<synchronous>, transform_indices = @transform_7, window_bounds = array<i64: 16, 32>}, {pipeline_mode = #tpu.pipeline_mode<synchronous>, transform_indices = @transform_8, window_bounds = array<i64: 16, 1>}, {transform_indices = @transform_9, window_bounds = array<i64: 16, 128>}]} {
    %c0 = arith.constant 0 : index
    %c0_0 = arith.constant 0 : index
    %0 = vector.load %arg4[%c0, %c0_0] : memref<1x128xf32, #tpu.memory_space<vmem>>, vector<1x128xf32>
    %c0_1 = arith.constant 0 : index
    %c0_2 = arith.constant 0 : index
    %1 = vector.load %arg5[%c0_1, %c0_2] : memref<1x128xf32, #tpu.memory_space<vmem>>, vector<1x128xf32>
    %c0_3 = arith.constant 0 : index
    %c0_4 = arith.constant 0 : index
    %2 = vector.load %arg1[%c0_3, %c0_4] : memref<32x128xf32, #tpu.memory_space<vmem>>, vector<32x128xf32>
    %c0_5 = arith.constant 0 : index
    %c0_6 = arith.constant 0 : index
    %3 = vector.load %arg2[%c0_5, %c0_6] : memref<32x96xf32, #tpu.memory_space<vmem>>, vector<32x96xf32>
    %c1_i32 = arith.constant 1 : i32
    %4 = tpu.dynamic_rotate %2 by %c1_i32 dim 1 : vector<32x128xf32>, i32 -> vector<32x128xf32>
    %5 = vector.broadcast %0 : vector<1x128xf32> to vector<32x128xf32>
    %6 = arith.mulf %4, %5 : vector<32x128xf32>
    %c127_i32 = arith.constant 127 : i32
    %7 = tpu.dynamic_rotate %2 by %c127_i32 dim 1 : vector<32x128xf32>, i32 -> vector<32x128xf32>
    %8 = vector.broadcast %1 : vector<1x128xf32> to vector<32x128xf32>
    %9 = arith.mulf %7, %8 : vector<32x128xf32>
    %10 = tpu.concatenate %6, %2, %9 in 0 : vector<32x128xf32>, vector<32x128xf32>, vector<32x128xf32> -> vector<96x128xf32>
    %cst = arith.constant dense<0.000000e+00> : vector<32x128xf32>
    %11 = tpu.matmul %3, %10, %cst {dimension_numbers = #tpu.dot_dimension_numbers<[1], [0], [0], [1], [0, 0, 1, 1], [], []>} : vector<32x96xf32>, vector<96x128xf32>, vector<32x128xf32> -> vector<32x128xf32>
    %c0_7 = arith.constant 0 : index
    %c0_8 = arith.constant 0 : index
    %12 = vector.load %arg3[%c0_7, %c0_8] : memref<32x1xf32, #tpu.memory_space<vmem>>, vector<32x1xf32>
    %13 = vector.broadcast %12 : vector<32x1xf32> to vector<32x128xf32>
    %14 = arith.addf %11, %13 : vector<32x128xf32>
    %cst_9 = arith.constant 0.000000e+00 : f32
    %15 = vector.broadcast %cst_9 : f32 to vector<32x128xf32>
    %16 = arith.maximumf %14, %15 : vector<32x128xf32>
    %c0_10 = arith.constant 0 : index
    %c0_11 = arith.constant 0 : index
    %c0_12 = arith.constant 0 : index
    %17 = vector.load %arg6[%c0_10, %c0_11, %c0_12] : memref<2x16x96xf32, #tpu.memory_space<vmem>>, vector<1x16x96xf32>
    %18 = vector.shape_cast %17 : vector<1x16x96xf32> to vector<16x96xf32>
    %c1_i32_13 = arith.constant 1 : i32
    %19 = tpu.dynamic_rotate %16 by %c1_i32_13 dim 1 : vector<32x128xf32>, i32 -> vector<32x128xf32>
    %20 = vector.broadcast %0 : vector<1x128xf32> to vector<32x128xf32>
    %21 = arith.mulf %19, %20 : vector<32x128xf32>
    %c127_i32_14 = arith.constant 127 : i32
    %22 = tpu.dynamic_rotate %16 by %c127_i32_14 dim 1 : vector<32x128xf32>, i32 -> vector<32x128xf32>
    %23 = vector.broadcast %1 : vector<1x128xf32> to vector<32x128xf32>
    %24 = arith.mulf %22, %23 : vector<32x128xf32>
    %25 = tpu.concatenate %21, %16, %24 in 0 : vector<32x128xf32>, vector<32x128xf32>, vector<32x128xf32> -> vector<96x128xf32>
    %cst_15 = arith.constant dense<0.000000e+00> : vector<16x128xf32>
    %26 = tpu.matmul %18, %25, %cst_15 {dimension_numbers = #tpu.dot_dimension_numbers<[1], [0], [0], [1], [0, 0, 1, 1], [], []>} : vector<16x96xf32>, vector<96x128xf32>, vector<16x128xf32> -> vector<16x128xf32>
    %cst_16 = arith.constant 0.000000e+00 : f32
    %27 = vector.broadcast %cst_16 : f32 to vector<16x128xf32>
    %28 = arith.maximumf %26, %27 : vector<16x128xf32>
    %c0_17 = arith.constant 0 : index
    %c0_18 = arith.constant 0 : index
    %c0_19 = arith.constant 0 : index
    %29 = vector.load %arg7[%c0_17, %c0_18, %c0_19] : memref<2x32x16xf32, #tpu.memory_space<vmem>>, vector<1x32x16xf32>
    %30 = vector.shape_cast %29 : vector<1x32x16xf32> to vector<32x16xf32>
    %cst_20 = arith.constant dense<0.000000e+00> : vector<32x128xf32>
    %31 = tpu.matmul %30, %28, %cst_20 {dimension_numbers = #tpu.dot_dimension_numbers<[1], [0], [0], [1], [0, 0, 1, 1], [], []>} : vector<32x16xf32>, vector<16x128xf32>, vector<32x128xf32> -> vector<32x128xf32>
    %32 = arith.addf %14, %31 : vector<32x128xf32>
    %cst_21 = arith.constant 0.000000e+00 : f32
    %33 = vector.broadcast %cst_21 : f32 to vector<32x128xf32>
    %34 = arith.maximumf %32, %33 : vector<32x128xf32>
    %c1 = arith.constant 1 : index
    %c0_22 = arith.constant 0 : index
    %c0_23 = arith.constant 0 : index
    %35 = vector.load %arg6[%c1, %c0_22, %c0_23] : memref<2x16x96xf32, #tpu.memory_space<vmem>>, vector<1x16x96xf32>
    %36 = vector.shape_cast %35 : vector<1x16x96xf32> to vector<16x96xf32>
    %c1_i32_24 = arith.constant 1 : i32
    %37 = tpu.dynamic_rotate %34 by %c1_i32_24 dim 1 : vector<32x128xf32>, i32 -> vector<32x128xf32>
    %38 = vector.broadcast %0 : vector<1x128xf32> to vector<32x128xf32>
    %39 = arith.mulf %37, %38 : vector<32x128xf32>
    %c127_i32_25 = arith.constant 127 : i32
    %40 = tpu.dynamic_rotate %34 by %c127_i32_25 dim 1 : vector<32x128xf32>, i32 -> vector<32x128xf32>
    %41 = vector.broadcast %1 : vector<1x128xf32> to vector<32x128xf32>
    %42 = arith.mulf %40, %41 : vector<32x128xf32>
    %43 = tpu.concatenate %39, %34, %42 in 0 : vector<32x128xf32>, vector<32x128xf32>, vector<32x128xf32> -> vector<96x128xf32>
    %cst_26 = arith.constant dense<0.000000e+00> : vector<16x128xf32>
    %44 = tpu.matmul %36, %43, %cst_26 {dimension_numbers = #tpu.dot_dimension_numbers<[1], [0], [0], [1], [0, 0, 1, 1], [], []>} : vector<16x96xf32>, vector<96x128xf32>, vector<16x128xf32> -> vector<16x128xf32>
    %cst_27 = arith.constant 0.000000e+00 : f32
    %45 = vector.broadcast %cst_27 : f32 to vector<16x128xf32>
    %46 = arith.maximumf %44, %45 : vector<16x128xf32>
    %c1_28 = arith.constant 1 : index
    %c0_29 = arith.constant 0 : index
    %c0_30 = arith.constant 0 : index
    %47 = vector.load %arg7[%c1_28, %c0_29, %c0_30] : memref<2x32x16xf32, #tpu.memory_space<vmem>>, vector<1x32x16xf32>
    %48 = vector.shape_cast %47 : vector<1x32x16xf32> to vector<32x16xf32>
    %cst_31 = arith.constant dense<0.000000e+00> : vector<32x128xf32>
    %49 = tpu.matmul %48, %46, %cst_31 {dimension_numbers = #tpu.dot_dimension_numbers<[1], [0], [0], [1], [0, 0, 1, 1], [], []>} : vector<32x16xf32>, vector<16x128xf32>, vector<32x128xf32> -> vector<32x128xf32>
    %50 = arith.addf %32, %49 : vector<32x128xf32>
    %cst_32 = arith.constant 0.000000e+00 : f32
    %51 = vector.broadcast %cst_32 : f32 to vector<32x128xf32>
    %52 = arith.maximumf %50, %51 : vector<32x128xf32>
    %c0_33 = arith.constant 0 : index
    %c0_34 = arith.constant 0 : index
    %53 = vector.load %arg8[%c0_33, %c0_34] : memref<16x32xf32, #tpu.memory_space<vmem>>, vector<16x32xf32>
    %cst_35 = arith.constant dense<0.000000e+00> : vector<16x128xf32>
    %54 = tpu.matmul %53, %52, %cst_35 {dimension_numbers = #tpu.dot_dimension_numbers<[1], [0], [0], [1], [0, 0, 1, 1], [], []>} : vector<16x32xf32>, vector<32x128xf32>, vector<16x128xf32> -> vector<16x128xf32>
    %c0_36 = arith.constant 0 : index
    %c0_37 = arith.constant 0 : index
    %55 = vector.load %arg9[%c0_36, %c0_37] : memref<16x1xf32, #tpu.memory_space<vmem>>, vector<16x1xf32>
    %56 = vector.broadcast %55 : vector<16x1xf32> to vector<16x128xf32>
    %57 = arith.addf %54, %56 : vector<16x128xf32>
    %c0_38 = arith.constant 0 : index
    %c0_39 = arith.constant 0 : index
    %58 = vector.load %arg10[%c0_38, %c0_39] : memref<16x128xf32, #tpu.memory_space<vmem>>, vector<16x128xf32>
    tpu.vector_store %arg10[%c0_38, %c0_39], %57 {strides = array<i32>} : memref<16x128xf32, #tpu.memory_space<vmem>>, vector<16x128xf32>,
    return
  }
  func.func @transform_0(%arg0: i32) -> (i32, i32) {
    %c0_i32 = arith.constant 0 : i32
    %c0_i32_0 = arith.constant 0 : i32
    return %c0_i32, %arg0 : i32, i32
  }
  func.func @transform_1(%arg0: i32) -> (i32, i32) {
    %c0_i32 = arith.constant 0 : i32
    %c0_i32_0 = arith.constant 0 : i32
    %c0_i32_1 = arith.constant 0 : i32
    return %c0_i32, %c0_i32_0 : i32, i32
  }
  func.func @transform_2(%arg0: i32) -> (i32, i32) {
    %c0_i32 = arith.constant 0 : i32
    %c0_i32_0 = arith.constant 0 : i32
    %c0_i32_1 = arith.constant 0 : i32
    return %c0_i32, %c0_i32_0 : i32, i32
  }
  func.func @transform_3(%arg0: i32) -> (i32, i32) {
    %c0_i32 = arith.constant 0 : i32
    %c0_i32_0 = arith.constant 0 : i32
    return %c0_i32, %arg0 : i32, i32
  }
  func.func @transform_4(%arg0: i32) -> (i32, i32) {
    %c0_i32 = arith.constant 0 : i32
    %c0_i32_0 = arith.constant 0 : i32
    return %c0_i32, %arg0 : i32, i32
  }
  func.func @transform_5(%arg0: i32) -> (i32, i32, i32) {
    %c0_i32 = arith.constant 0 : i32
    %c0_i32_0 = arith.constant 0 : i32
    %c0_i32_1 = arith.constant 0 : i32
    %c0_i32_2 = arith.constant 0 : i32
    return %c0_i32, %c0_i32_0, %c0_i32_1 : i32, i32, i32
  }
  func.func @transform_6(%arg0: i32) -> (i32, i32, i32) {
    %c0_i32 = arith.constant 0 : i32
    %c0_i32_0 = arith.constant 0 : i32
    %c0_i32_1 = arith.constant 0 : i32
    %c0_i32_2 = arith.constant 0 : i32
    return %c0_i32, %c0_i32_0, %c0_i32_1 : i32, i32, i32
  }
  func.func @transform_7(%arg0: i32) -> (i32, i32) {
    %c0_i32 = arith.constant 0 : i32
    %c0_i32_0 = arith.constant 0 : i32
    %c0_i32_1 = arith.constant 0 : i32
    return %c0_i32, %c0_i32_0 : i32, i32
  }
  func.func @transform_8(%arg0: i32) -> (i32, i32) {
    %c0_i32 = arith.constant 0 : i32
    %c0_i32_0 = arith.constant 0 : i32
    %c0_i32_1 = arith.constant 0 : i32
    return %c0_i32, %c0_i32_0 : i32, i32
  }
  func.func @transform_9(%arg0: i32) -> (i32, i32) {
    %c0_i32 = arith.constant 0 : i32
    %c0_i32_0 = arith.constant 0 : i32
    return %c0_i32, %arg0 : i32, i32
  }
}

</mosaic_0001>

<llo_original>
// kernel: encoder_forward.3
$region0: #{encoder_forward.3}
  #allocation0 [shape = 'u32[]', space=smem, size = 0x4, offset = 0x4, fixed_abs, tag = 'smem constant byte address 0x4 - core index']
  #allocation1 [shape = 'u32[144,128]{1,0:T(1,128)}', space=vmem, size = 0x12000, scoped, tag = 'internal scratch']
  %s0 = inlined_call_operand.vmem [shape: f32[2,128], index: 0, kind: input, shape index: {}]
  %s1 = inlined_call_operand.vmem [shape: f32[3,16,2], index: 1, kind: input, shape index: {}]
  %s2 = inlined_call_operand.vmem [shape: f32[16,1], index: 2, kind: input, shape index: {}]
  %s3 = inlined_call_operand.vmem [shape: f32[1,128], index: 3, kind: input, shape index: {}]
  %s4 = inlined_call_operand.vmem [shape: f32[1,128], index: 4, kind: input, shape index: {}]
  %s5 = inlined_call_operand.vmem [shape: f32[16,128], index: 5, kind: output, shape index: {}]
  %s6 = sld [smem:[#allocation0]]
  $region30: #{encoder_forward.3} parent=0
    _
  %s8 = ssub.s32 1, %s6
  %s9 = scalar_select 0, %s8, %s6
  // Predicated region
  $region2: #{encoder_forward.3} parent=0 // pred_check
    _
  $region3: #{encoder_forward.3} parent=0 // pred_check_branch
    %11 = sbr.rel (0) target = $region5
  $region4: #{encoder_forward.3} parent=0 // pred_region
    _
  $region5: #{encoder_forward.3} parent=0 // pred_fallthru
    _
  // Predicated region
  $region6: #{encoder_forward.3} parent=0 // pred_check
    _
  $region7: #{encoder_forward.3} parent=0 // pred_check_branch
    %13 = sbr.rel (0) target = $region9
  $region8: #{encoder_forward.3} parent=0 // pred_region
    _
  $region9: #{encoder_forward.3} parent=0 // pred_fallthru
    _
  // Predicated region
  $region10: #{encoder_forward.3} parent=0 // pred_check
    _
  $region11: #{encoder_forward.3} parent=0 // pred_check_branch
    %15 = sbr.rel (0) target = $region13
  $region12: #{encoder_forward.3} parent=0 // pred_region
    _
  $region13: #{encoder_forward.3} parent=0 // pred_fallthru
    _
  // Predicated region
  $region14: #{encoder_forward.3} parent=0 // pred_check
    _
  $region15: #{encoder_forward.3} parent=0 // pred_check_branch
    %17 = sbr.rel (0) target = $region17
  $region16: #{encoder_forward.3} parent=0 // pred_region
    _
  $region17: #{encoder_forward.3} parent=0 // pred_fallthru
    _
  // Predicated region
  $region18: #{encoder_forward.3} parent=0 // pred_check
    _
  $region19: #{encoder_forward.3} parent=0 // pred_check_branch
    %19 = sbr.rel (0) target = $region21
  $region20: #{encoder_forward.3} parent=0 // pred_region
    _
  $region21: #{encoder_forward.3} parent=0 // pred_fallthru
    _
  %v20 = vld [vmem:[%s0] sm:$0x3]
  %s21 = scalar_lea.vmem %s1, 16
  %v22 = vld [vmem:[%s21] sm:$0xff]
  %v23 = vld [vmem:[%s21 + $0x8] sm:$0xff]
  %24 = vrot.lane.b32.xlu0 %v20, 1
  %v25 = vpop.permute.xlu0 %24
  %v26 = vld [vmem:[%s3] sm:$0x1]
  %v28 = vlaneseq
  %v29 = vshrl.u32 %v28, 7
  %v30 = vsub.s32 0, %v29
  %v31 = vrot.slane %v26, %v30
  %v33 = vmul.f32 %v25, %v31
  %v34 = vld [vmem:[%s1] sm:$0xff]
  %v35 = vld [vmem:[%s1 + $0x8] sm:$0xff]
  %vm36 = vcmask 15360
  %v38 = vsel %vm36, %v34, 0
  %v41 = vsel %vm36, %v35, 0
  %vm43 = vcmask 1041408
  %v45 = vsel %vm43, %v33, 0
  %47 = vmatprep.subr.mxu0 0.0
  %48 = vmatpush1.msra.mxu0 %v45
  %49 = vmatprep.subr.mxu0 0.0
  %50 = vmatpush1.msra.mxu0 0.0
  %51 = vmatprep.subr.mxu0 0.0
  %52 = vmatpush1.msra.mxu0 0.0
  %53 = vmatprep.subr.mxu0 0.0
  %54 = vmatpush1.msra.mxu0 0.0
  %55 = vmatprep.subr.mxu0 0.0
  %56 = vmatpush1.msra.mxu0 0.0
  %57 = vmatprep.subr.mxu0 0.0
  %58 = vmatpush1.msra.mxu0 0.0
  %59 = vmatprep.subr.mxu0 0.0
  %60 = vmatpush1.msra.mxu0 0.0
  %61 = vmatprep.subr.mxu0 0.0
  %62 = vmatpush1.msra.mxu0 0.0
  %63 = vmatprep.subr.mxu0 0.0
  %64 = vmatpush1.msra.mxu0 0.0
  %65 = vmatprep.subr.mxu0 0.0
  %66 = vmatpush1.msra.mxu0 0.0
  %67 = vmatprep.subr.mxu0 0.0
  %68 = vmatpush1.msra.mxu0 0.0
  %69 = vmatprep.subr.mxu0 0.0
  %70 = vmatpush1.msra.mxu0 0.0
  %71 = vmatprep.subr.mxu0 0.0
  %72 = vmatpush1.msra.mxu0 0.0
  %73 = vmatprep.subr.mxu0 0.0
  %74 = vmatpush1.msra.mxu0 0.0
  %75 = vmatprep.subr.mxu0 0.0
  %76 = vmatpush1.msra.mxu0 0.0
  %77 = vmatprep.subr.mxu0 0.0
  %78 = vmatpush1.msra.mxu0 0.0
  %79 = vmatprep.subr.mxu0 0.0
  %80 = vmatpush1.msra.mxu0 0.0
  %81 = vmatprep.subr.mxu0 0.0
  %82 = vmatpush1.msra.mxu0 0.0
  %83 = vmatprep.subr.mxu0 0.0
  %84 = vmatpush1.msra.mxu0 0.0
  %85 = vmatprep.subr.mxu0 0.0
  %86 = vmatpush1.msra.mxu0 0.0
  %87 = vmatprep.subr.mxu0 0.0
  %88 = vmatpush1.msra.mxu0 0.0
  %89 = vmatprep.subr.mxu0 0.0
  %90 = vmatpush1.msra.mxu0 0.0
  %91 = vmatprep.subr.mxu0 0.0
  %92 = vmatpush1.msra.mxu0 0.0
  %93 = vmatprep.subr.mxu0 0.0
  %94 = vmatpush1.msra.mxu0 0.0
  %95 = vmatprep.subr.mxu0 0.0
  %96 = vmatpush1.msra.mxu0 0.0
  %97 = vmatprep.subr.mxu0 0.0
  %98 = vmatpush1.msra.mxu0 0.0
  %99 = vmatprep.subr.mxu0 0.0
  %100 = vmatpush1.msra.mxu0 0.0
  %101 = vmatprep.subr.mxu0 0.0
  %102 = vmatpush1.msra.mxu0 0.0
  %103 = vmatprep.subr.mxu0 0.0
  %104 = vmatpush1.msra.mxu0 0.0
  %105 = vmatprep.subr.mxu0 0.0
  %106 = vmatpush1.msra.mxu0 0.0
  %107 = vmatprep.subr.mxu0 0.0
  %108 = vmatpush1.msra.mxu0 0.0
  %109 = vmatprep.subr.mxu0 0.0
  %110 = vmatpush1.msra.mxu0 0.0
  %111 = vmatprep.mubr.f32.mxu0 0.0
  %112 = vmatmul.mubr.f32.gmra.mrb[0].mxu0 %v38
  %v113 = vpop.f32.mrb[0].mxu0
  %v114 = vadd.f32 0.0, %v113
  %v115 = vpop.f32.mrb[0].mxu0
  %116 = vmatprep.mubr.f32.mxu0 0.0
  %117 = vmatmul.mubr.f32.gmra.mrb[0].mxu0 %v41
  %v118 = vpop.f32.mrb[0].mxu0
  %v119 = vadd.f32 0.0, %v118
  %v120 = vpop.f32.mrb[0].mxu0
  %121 = vdwg.mxu0
  %v123 = vsel %vm36, %v22, 0
  %v126 = vsel %vm36, %v23, 0
  %v129 = vsel %vm43, %v20, 0
  %131 = vmatprep.subr.mxu0 0.0
  %132 = vmatpush1.msra.mxu0 %v129
  %133 = vmatprep.subr.mxu0 0.0
  %134 = vmatpush1.msra.mxu0 0.0
  %135 = vmatprep.subr.mxu0 0.0
  %136 = vmatpush1.msra.mxu0 0.0
  %137 = vmatprep.subr.mxu0 0.0
  %138 = vmatpush1.msra.mxu0 0.0
  %139 = vmatprep.subr.mxu0 0.0
  %140 = vmatpush1.msra.mxu0 0.0
  %141 = vmatprep.subr.mxu0 0.0
  %142 = vmatpush1.msra.mxu0 0.0
  %143 = vmatprep.subr.mxu0 0.0
  %144 = vmatpush1.msra.mxu0 0.0
  %145 = vmatprep.subr.mxu0 0.0
  %146 = vmatpush1.msra.mxu0 0.0
  %147 = vmatprep.subr.mxu0 0.0
  %148 = vmatpush1.msra.mxu0 0.0
  %149 = vmatprep.subr.mxu0 0.0
  %150 = vmatpush1.msra.mxu0 0.0
  %151 = vmatprep.subr.mxu0 0.0
  %152 = vmatpush1.msra.mxu0 0.0
  %153 = vmatprep.subr.mxu0 0.0
  %154 = vmatpush1.msra.mxu0 0.0
  %155 = vmatprep.subr.mxu0 0.0
  %156 = vmatpush1.msra.mxu0 0.0
  %157 = vmatprep.subr.mxu0 0.0
  %158 = vmatpush1.msra.mxu0 0.0
  %159 = vmatprep.subr.mxu0 0.0
  %160 = vmatpush1.msra.mxu0 0.0
  %161 = vmatprep.subr.mxu0 0.0
  %162 = vmatpush1.msra.mxu0 0.0
  %163 = vmatprep.subr.mxu0 0.0
  %164 = vmatpush1.msra.mxu0 0.0
  %165 = vmatprep.subr.mxu0 0.0
  %166 = vmatpush1.msra.mxu0 0.0
  %167 = vmatprep.subr.mxu0 0.0
  %168 = vmatpush1.msra.mxu0 0.0
  %169 = vmatprep.subr.mxu0 0.0
  %170 = vmatpush1.msra.mxu0 0.0
  %171 = vmatprep.subr.mxu0 0.0
  %172 = vmatpush1.msra.mxu0 0.0
  %173 = vmatprep.subr.mxu0 0.0
  %174 = vmatpush1.msra.mxu0 0.0
  %175 = vmatprep.subr.mxu0 0.0
  %176 = vmatpush1.msra.mxu0 0.0
  %177 = vmatprep.subr.mxu0 0.0
  %178 = vmatpush1.msra.mxu0 0.0
  %179 = vmatprep.subr.mxu0 0.0
  %180 = vmatpush1.msra.mxu0 0.0
  %181 = vmatprep.subr.mxu0 0.0
  %182 = vmatpush1.msra.mxu0 0.0
  %183 = vmatprep.subr.mxu0 0.0
  %184 = vmatpush1.msra.mxu0 0.0
  %185 = vmatprep.subr.mxu0 0.0
  %186 = vmatpush1.msra.mxu0 0.0
  %187 = vmatprep.subr.mxu0 0.0
  %188 = vmatpush1.msra.mxu0 0.0
  %189 = vmatprep.subr.mxu0 0.0
  %190 = vmatpush1.msra.mxu0 0.0
  %191 = vmatprep.subr.mxu0 0.0
  %192 = vmatpush1.msra.mxu0 0.0
  %193 = vmatprep.subr.mxu0 0.0
  %194 = vmatpush1.msra.mxu0 0.0
  %195 = vmatprep.mubr.f32.mxu0 0.0
  %196 = vmatmul.mubr.f32.gmra.mrb[0].mxu0 %v123
  %v197 = vpop.f32.mrb[0].mxu0
  %v198 = vadd.f32 %v114, %v197
  %v199 = vpop.f32.mrb[0].mxu0
  %200 = vmatprep.mubr.f32.mxu0 0.0
  %201 = vmatmul.mubr.f32.gmra.mrb[0].mxu0 %v126
  %v202 = vpop.f32.mrb[0].mxu0
  %v203 = vadd.f32 %v119, %v202
  %v204 = vpop.f32.mrb[0].mxu0
  %205 = vdwg.mxu0
  %206 = vrot.lane.b32.xlu0 %v20, 127
  %v207 = vpop.permute.xlu0 %206
  %v208 = vld [vmem:[%s4] sm:$0x1]
  %v210 = vlaneseq
  %v211 = vshrl.u32 %v210, 7
  %v212 = vsub.s32 0, %v211
  %v213 = vrot.slane %v208, %v212
  %v215 = vmul.f32 %v207, %v213
  %s216 = scalar_lea.vmem %s1, 32
  %v217 = vld [vmem:[%s216] sm:$0xff]
  %v218 = vld [vmem:[%s216 + $0x8] sm:$0xff]
  %v220 = vsel %vm36, %v217, 0
  %v223 = vsel %vm36, %v218, 0
  %v226 = vsel %vm43, %v215, 0
  %228 = vmatprep.subr.mxu0 0.0
  %229 = vmatpush1.msra.mxu0 %v226
  %230 = vmatprep.subr.mxu0 0.0
  %231 = vmatpush1.msra.mxu0 0.0
  %232 = vmatprep.subr.mxu0 0.0
  %233 = vmatpush1.msra.mxu0 0.0
  %234 = vmatprep.subr.mxu0 0.0
  %235 = vmatpush1.msra.mxu0 0.0
  %236 = vmatprep.subr.mxu0 0.0
  %237 = vmatpush1.msra.mxu0 0.0
  %238 = vmatprep.subr.mxu0 0.0
  %239 = vmatpush1.msra.mxu0 0.0
  %240 = vmatprep.subr.mxu0 0.0
  %241 = vmatpush1.msra.mxu0 0.0
  %242 = vmatprep.subr.mxu0 0.0
  %243 = vmatpush1.msra.mxu0 0.0
  %244 = vmatprep.subr.mxu0 0.0
  %245 = vmatpush1.msra.mxu0 0.0
  %246 = vmatprep.subr.mxu0 0.0
  %247 = vmatpush1.msra.mxu0 0.0
  %248 = vmatprep.subr.mxu0 0.0
  %249 = vmatpush1.msra.mxu0 0.0
  %250 = vmatprep.subr.mxu0 0.0
  %251 = vmatpush1.msra.mxu0 0.0
  %252 = vmatprep.subr.mxu0 0.0
  %253 = vmatpush1.msra.mxu0 0.0
  %254 = vmatprep.subr.mxu0 0.0
  %255 = vmatpush1.msra.mxu0 0.0
  %256 = vmatprep.subr.mxu0 0.0
  %257 = vmatpush1.msra.mxu0 0.0
  %258 = vmatprep.subr.mxu0 0.0
  %259 = vmatpush1.msra.mxu0 0.0
  %260 = vmatprep.subr.mxu0 0.0
  %261 = vmatpush1.msra.mxu0 0.0
  %262 = vmatprep.subr.mxu0 0.0
  %263 = vmatpush1.msra.mxu0 0.0
  %264 = vmatprep.subr.mxu0 0.0
  %265 = vmatpush1.msra.mxu0 0.0
  %266 = vmatprep.subr.mxu0 0.0
  %267 = vmatpush1.msra.mxu0 0.0
  %268 = vmatprep.subr.mxu0 0.0
  %269 = vmatpush1.msra.mxu0 0.0
  %270 = vmatprep.subr.mxu0 0.0
  %271 = vmatpush1.msra.mxu0 0.0
  %272 = vmatprep.subr.mxu0 0.0
  %273 = vmatpush1.msra.mxu0 0.0
  %274 = vmatprep.subr.mxu0 0.0
  %275 = vmatpush1.msra.mxu0 0.0
  %276 = vmatprep.subr.mxu0 0.0
  %277 = vmatpush1.msra.mxu0 0.0
  %278 = vmatprep.subr.mxu0 0.0
  %279 = vmatpush1.msra.mxu0 0.0
  %280 = vmatprep.subr.mxu0 0.0
  %281 = vmatpush1.msra.mxu0 0.0
  %282 = vmatprep.subr.mxu0 0.0
  %283 = vmatpush1.msra.mxu0 0.0
  %284 = vmatprep.subr.mxu0 0.0
  %285 = vmatpush1.msra.mxu0 0.0
  %286 = vmatprep.subr.mxu0 0.0
  %287 = vmatpush1.msra.mxu0 0.0
  %288 = vmatprep.subr.mxu0 0.0
  %289 = vmatpush1.msra.mxu0 0.0
  %290 = vmatprep.subr.mxu0 0.0
  %291 = vmatpush1.msra.mxu0 0.0
  %292 = vmatprep.mubr.f32.mxu0 0.0
  %293 = vmatmul.mubr.f32.gmra.mrb[0].mxu0 %v220
  %v294 = vpop.f32.mrb[0].mxu0
  %v295 = vadd.f32 0.0, %v294
  %v296 = vpop.f32.mrb[0].mxu0
  %297 = vmatprep.mubr.f32.mxu0 0.0
  %298 = vmatmul.mubr.f32.gmra.mrb[0].mxu0 %v223
  %v299 = vpop.f32.mrb[0].mxu0
  %v300 = vadd.f32 0.0, %v299
  %v301 = vpop.f32.mrb[0].mxu0
  %302 = vdwg.mxu0
  %v303 = vadd.f32 %v198, %v295
  %v304 = vadd.f32 %v203, %v300
  %v305 = vld [vmem:[%s2] sm:$0xff]
  %v306 = vld [vmem:[%s2 + $0x8] sm:$0xff]
  %308 = vset.pattern.permute.xlu0 0
  %309 = vperm.xlu0 %308, %v305
  %v310 = vpop.permute.xlu0 %309
  %313 = vset.pattern.permute.xlu0 0
  %314 = vperm.xlu0 %313, %v306
  %v315 = vpop.permute.xlu0 %314
  %v317 = vadd.f32 %v303, %v310
  %v318 = vadd.f32 %v304, %v315
  %v319 = vmax.f32 %v317, 0.0
  %v320 = vmax.f32 %v318, 0.0
  %321 = vst [vmem:[%s5] sm:$0xff] %v319
  %322 = vst [vmem:[%s5 + $0x8] sm:$0xff] %v320
  // Predicated region
  $region22: #{encoder_forward.3} parent=0 // pred_check
    _
  $region23: #{encoder_forward.3} parent=0 // pred_check_branch
    %324 = sbr.rel (0) target = $region25
  $region24: #{encoder_forward.3} parent=0 // pred_region
    _
  $region25: #{encoder_forward.3} parent=0 // pred_fallthru
    _
  // Predicated region
  $region26: #{encoder_forward.3} parent=0 // pred_check
    _
  $region27: #{encoder_forward.3} parent=0 // pred_check_branch
    %326 = sbr.rel (0) target = $region29
  $region28: #{encoder_forward.3} parent=0 // pred_region
    _
  $region29: #{encoder_forward.3} parent=0 // pred_fallthru
    _

// kernel: encoder_forward.4
$region0: #{encoder_forward.4}
  #allocation0 [shape = 'u32[]', space=smem, size = 0x4, offset = 0x4, fixed_abs, tag = 'smem constant byte address 0x4 - core index']
  #allocation1 [shape = 'u32[144,128]{1,0:T(1,128)}', space=vmem, size = 0x12000, scoped, tag = 'internal scratch']
  %s0 = inlined_call_operand.vmem [shape: f32[32,128], index: 0, kind: input, shape index: {}]
  %s1 = inlined_call_operand.vmem [shape: f32[3,32,32], index: 1, kind: input, shape index: {}]
  %s2 = inlined_call_operand.vmem [shape: f32[32,1], index: 2, kind: input, shape index: {}]
  %s3 = inlined_call_operand.vmem [shape: f32[1,128], index: 3, kind: input, shape index: {}]
  %s4 = inlined_call_operand.vmem [shape: f32[1,128], index: 4, kind: input, shape index: {}]
  %s5 = inlined_call_operand.vmem [shape: f32[32,128], index: 5, kind: output, shape index: {}]
  %s6 = sld [smem:[#allocation0]]
  $region30: #{encoder_forward.4} parent=0
    _
  %s8 = ssub.s32 1, %s6
  %s9 = scalar_select 0, %s8, %s6
  // Predicated region
  $region2: #{encoder_forward.4} parent=0 // pred_check
    _
  $region3: #{encoder_forward.4} parent=0 // pred_check_branch
    %11 = sbr.rel (0) target = $region5
  $region4: #{encoder_forward.4} parent=0 // pred_region
    _
  $region5: #{encoder_forward.4} parent=0 // pred_fallthru
    _
  // Predicated region
  $region6: #{encoder_forward.4} parent=0 // pred_check
    _
  $region7: #{encoder_forward.4} parent=0 // pred_check_branch
    %13 = sbr.rel (0) target = $region9
  $region8: #{encoder_forward.4} parent=0 // pred_region
    _
  $region9: #{encoder_forward.4} parent=0 // pred_fallthru
    _
  // Predicated region
  $region10: #{encoder_forward.4} parent=0 // pred_check
    _
  $region11: #{encoder_forward.4} parent=0 // pred_check_branch
    %15 = sbr.rel (0) target = $region13
  $region12: #{encoder_forward.4} parent=0 // pred_region
    _
  $region13: #{encoder_forward.4} parent=0 // pred_fallthru
    _
  // Predicated region
  $region14: #{encoder_forward.4} parent=0 // pred_check
    _
  $region15: #{encoder_forward.4} parent=0 // pred_check_branch
    %17 = sbr.rel (0) target = $region17
  $region16: #{encoder_forward.4} parent=0 // pred_region
    _
  $region17: #{encoder_forward.4} parent=0 // pred_fallthru
    _
  // Predicated region
  $region18: #{encoder_forward.4} parent=0 // pred_check
    _
  $region19: #{encoder_forward.4} parent=0 // pred_check_branch
    %19 = sbr.rel (0) target = $region21
  $region20: #{encoder_forward.4} parent=0 // pred_region
    _
  $region21: #{encoder_forward.4} parent=0 // pred_fallthru
    _
  %v20 = vld [vmem:[%s0] sm:$0xff]
  %v21 = vld [vmem:[%s0 + $0x8] sm:$0xff]
  %v22 = vld [vmem:[%s0 + $0x10] sm:$0xff]
  %v23 = vld [vmem:[%s0 + $0x18] sm:$0xff]
  %s24 = scalar_lea.vmem %s1, 32
  %v25 = vld [vmem:[%s24] sm:$0xff]
  %v26 = vld [vmem:[%s24 + $0x8] sm:$0xff]
  %v27 = vld [vmem:[%s24 + $0x10] sm:$0xff]
  %v28 = vld [vmem:[%s24 + $0x18] sm:$0xff]
  %29 = vrot.lane.b32.xlu0 %v20, 1
  %v30 = vpop.permute.xlu0 %29
  %31 = vrot.lane.b32.xlu0 %v21, 1
  %v32 = vpop.permute.xlu0 %31
  %33 = vrot.lane.b32.xlu0 %v22, 1
  %v34 = vpop.permute.xlu0 %33
  %35 = vrot.lane.b32.xlu0 %v23, 1
  %v36 = vpop.permute.xlu0 %35
  %v37 = vld [vmem:[%s3] sm:$0x1]
  %v39 = vlaneseq
  %v40 = vshrl.u32 %v39, 7
  %v41 = vsub.s32 0, %v40
  %v42 = vrot.slane %v37, %v41
  %v44 = vmul.f32 %v30, %v42
  %v45 = vmul.f32 %v32, %v42
  %v46 = vmul.f32 %v34, %v42
  %v47 = vmul.f32 %v36, %v42
  %v48 = vld [vmem:[%s1] sm:$0xff]
  %v49 = vld [vmem:[%s1 + $0x8] sm:$0xff]
  %v50 = vld [vmem:[%s1 + $0x10] sm:$0xff]
  %v51 = vld [vmem:[%s1 + $0x18] sm:$0xff]
  %vm52 = vcmask 261120
  %v54 = vsel %vm52, %v48, 0
  %v57 = vsel %vm52, %v49, 0
  %v60 = vsel %vm52, %v50, 0
  %v63 = vsel %vm52, %v51, 0
  %65 = vmatprep.subr.mxu0 0.0
  %66 = vmatpush1.msra.mxu0 %v44
  %67 = vmatprep.subr.mxu0 0.0
  %68 = vmatpush1.msra.mxu0 %v45
  %69 = vmatprep.subr.mxu0 0.0
  %70 = vmatpush1.msra.mxu0 %v46
  %71 = vmatprep.subr.mxu0 0.0
  %72 = vmatpush1.msra.mxu0 %v47
  %73 = vmatprep.subr.mxu0 0.0
  %74 = vmatpush1.msra.mxu0 0.0
  %75 = vmatprep.subr.mxu0 0.0
  %76 = vmatpush1.msra.mxu0 0.0
  %77 = vmatprep.subr.mxu0 0.0
  %78 = vmatpush1.msra.mxu0 0.0
  %79 = vmatprep.subr.mxu0 0.0
  %80 = vmatpush1.msra.mxu0 0.0
  %81 = vmatprep.subr.mxu0 0.0
  %82 = vmatpush1.msra.mxu0 0.0
  %83 = vmatprep.subr.mxu0 0.0
  %84 = vmatpush1.msra.mxu0 0.0
  %85 = vmatprep.subr.mxu0 0.0
  %86 = vmatpush1.msra.mxu0 0.0
  %87 = vmatprep.subr.mxu0 0.0
  %88 = vmatpush1.msra.mxu0 0.0
  %89 = vmatprep.subr.mxu0 0.0
  %90 = vmatpush1.msra.mxu0 0.0
  %91 = vmatprep.subr.mxu0 0.0
  %92 = vmatpush1.msra.mxu0 0.0
  %93 = vmatprep.subr.mxu0 0.0
  %94 = vmatpush1.msra.mxu0 0.0
  %95 = vmatprep.subr.mxu0 0.0
  %96 = vmatpush1.msra.mxu0 0.0
  %97 = vmatprep.subr.mxu0 0.0
  %98 = vmatpush1.msra.mxu0 0.0
  %99 = vmatprep.subr.mxu0 0.0
  %100 = vmatpush1.msra.mxu0 0.0
  %101 = vmatprep.subr.mxu0 0.0
  %102 = vmatpush1.msra.mxu0 0.0
  %103 = vmatprep.subr.mxu0 0.0
  %104 = vmatpush1.msra.mxu0 0.0
  %105 = vmatprep.subr.mxu0 0.0
  %106 = vmatpush1.msra.mxu0 0.0
  %107 = vmatprep.subr.mxu0 0.0
  %108 = vmatpush1.msra.mxu0 0.0
  %109 = vmatprep.subr.mxu0 0.0
  %110 = vmatpush1.msra.mxu0 0.0
  %111 = vmatprep.subr.mxu0 0.0
  %112 = vmatpush1.msra.mxu0 0.0
  %113 = vmatprep.subr.mxu0 0.0
  %114 = vmatpush1.msra.mxu0 0.0
  %115 = vmatprep.subr.mxu0 0.0
  %116 = vmatpush1.msra.mxu0 0.0
  %117 = vmatprep.subr.mxu0 0.0
  %118 = vmatpush1.msra.mxu0 0.0
  %119 = vmatprep.subr.mxu0 0.0
  %120 = vmatpush1.msra.mxu0 0.0
  %121 = vmatprep.subr.mxu0 0.0
  %122 = vmatpush1.msra.mxu0 0.0
  %123 = vmatprep.subr.mxu0 0.0
  %124 = vmatpush1.msra.mxu0 0.0
  %125 = vmatprep.subr.mxu0 0.0
  %126 = vmatpush1.msra.mxu0 0.0
  %127 = vmatprep.subr.mxu0 0.0
  %128 = vmatpush1.msra.mxu0 0.0
  %129 = vmatprep.mubr.f32.mxu0 0.0
  %130 = vmatmul.mubr.f32.gmra.mrb[0].mxu0 %v54
  %v131 = vpop.f32.mrb[0].mxu0
  %v132 = vadd.f32 0.0, %v131
  %v133 = vpop.f32.mrb[0].mxu0
  %134 = vmatprep.mubr.f32.mxu0 0.0
  %135 = vmatmul.mubr.f32.gmra.mrb[0].mxu0 %v57
  %v136 = vpop.f32.mrb[0].mxu0
  %v137 = vadd.f32 0.0, %v136
  %v138 = vpop.f32.mrb[0].mxu0
  %139 = vmatprep.mubr.f32.mxu0 0.0
  %140 = vmatmul.mubr.f32.gmra.mrb[0].mxu0 %v60
  %v141 = vpop.f32.mrb[0].mxu0
  %v142 = vadd.f32 0.0, %v141
  %v143 = vpop.f32.mrb[0].mxu0
  %144 = vmatprep.mubr.f32.mxu0 0.0
  %145 = vmatmul.mubr.f32.gmra.mrb[0].mxu0 %v63
  %v146 = vpop.f32.mrb[0].mxu0
  %v147 = vadd.f32 0.0, %v146
  %v148 = vpop.f32.mrb[0].mxu0
  %149 = vdwg.mxu0
  %v151 = vsel %vm52, %v25, 0
  %v154 = vsel %vm52, %v26, 0
  %v157 = vsel %vm52, %v27, 0
  %v160 = vsel %vm52, %v28, 0
  %162 = vmatprep.subr.mxu0 0.0
  %163 = vmatpush1.msra.mxu0 %v20
  %164 = vmatprep.subr.mxu0 0.0
  %165 = vmatpush1.msra.mxu0 %v21
  %166 = vmatprep.subr.mxu0 0.0
  %167 = vmatpush1.msra.mxu0 %v22
  %168 = vmatprep.subr.mxu0 0.0
  %169 = vmatpush1.msra.mxu0 %v23
  %170 = vmatprep.subr.mxu0 0.0
  %171 = vmatpush1.msra.mxu0 0.0
  %172 = vmatprep.subr.mxu0 0.0
  %173 = vmatpush1.msra.mxu0 0.0
  %174 = vmatprep.subr.mxu0 0.0
  %175 = vmatpush1.msra.mxu0 0.0
  %176 = vmatprep.subr.mxu0 0.0
  %177 = vmatpush1.msra.mxu0 0.0
  %178 = vmatprep.subr.mxu0 0.0
  %179 = vmatpush1.msra.mxu0 0.0
  %180 = vmatprep.subr.mxu0 0.0
  %181 = vmatpush1.msra.mxu0 0.0
  %182 = vmatprep.subr.mxu0 0.0
  %183 = vmatpush1.msra.mxu0 0.0
  %184 = vmatprep.subr.mxu0 0.0
  %185 = vmatpush1.msra.mxu0 0.0
  %186 = vmatprep.subr.mxu0 0.0
  %187 = vmatpush1.msra.mxu0 0.0
  %188 = vmatprep.subr.mxu0 0.0
  %189 = vmatpush1.msra.mxu0 0.0
  %190 = vmatprep.subr.mxu0 0.0
  %191 = vmatpush1.msra.mxu0 0.0
  %192 = vmatprep.subr.mxu0 0.0
  %193 = vmatpush1.msra.mxu0 0.0
  %194 = vmatprep.subr.mxu0 0.0
  %195 = vmatpush1.msra.mxu0 0.0
  %196 = vmatprep.subr.mxu0 0.0
  %197 = vmatpush1.msra.mxu0 0.0
  %198 = vmatprep.subr.mxu0 0.0
  %199 = vmatpush1.msra.mxu0 0.0
  %200 = vmatprep.subr.mxu0 0.0
  %201 = vmatpush1.msra.mxu0 0.0
  %202 = vmatprep.subr.mxu0 0.0
  %203 = vmatpush1.msra.mxu0 0.0
  %204 = vmatprep.subr.mxu0 0.0
  %205 = vmatpush1.msra.mxu0 0.0
  %206 = vmatprep.subr.mxu0 0.0
  %207 = vmatpush1.msra.mxu0 0.0
  %208 = vmatprep.subr.mxu0 0.0
  %209 = vmatpush1.msra.mxu0 0.0
  %210 = vmatprep.subr.mxu0 0.0
  %211 = vmatpush1.msra.mxu0 0.0
  %212 = vmatprep.subr.mxu0 0.0
  %213 = vmatpush1.msra.mxu0 0.0
  %214 = vmatprep.subr.mxu0 0.0
  %215 = vmatpush1.msra.mxu0 0.0
  %216 = vmatprep.subr.mxu0 0.0
  %217 = vmatpush1.msra.mxu0 0.0
  %218 = vmatprep.subr.mxu0 0.0
  %219 = vmatpush1.msra.mxu0 0.0
  %220 = vmatprep.subr.mxu0 0.0
  %221 = vmatpush1.msra.mxu0 0.0
  %222 = vmatprep.subr.mxu0 0.0
  %223 = vmatpush1.msra.mxu0 0.0
  %224 = vmatprep.subr.mxu0 0.0
  %225 = vmatpush1.msra.mxu0 0.0
  %226 = vmatprep.mubr.f32.mxu0 0.0
  %227 = vmatmul.mubr.f32.gmra.mrb[0].mxu0 %v151
  %v228 = vpop.f32.mrb[0].mxu0
  %v229 = vadd.f32 %v132, %v228
  %v230 = vpop.f32.mrb[0].mxu0
  %231 = vmatprep.mubr.f32.mxu0 0.0
  %232 = vmatmul.mubr.f32.gmra.mrb[0].mxu0 %v154
  %v233 = vpop.f32.mrb[0].mxu0
  %v234 = vadd.f32 %v137, %v233
  %v235 = vpop.f32.mrb[0].mxu0
  %236 = vmatprep.mubr.f32.mxu0 0.0
  %237 = vmatmul.mubr.f32.gmra.mrb[0].mxu0 %v157
  %v238 = vpop.f32.mrb[0].mxu0
  %v239 = vadd.f32 %v142, %v238
  %v240 = vpop.f32.mrb[0].mxu0
  %241 = vmatprep.mubr.f32.mxu0 0.0
  %242 = vmatmul.mubr.f32.gmra.mrb[0].mxu0 %v160
  %v243 = vpop.f32.mrb[0].mxu0
  %v244 = vadd.f32 %v147, %v243
  %v245 = vpop.f32.mrb[0].mxu0
  %246 = vdwg.mxu0
  %247 = vrot.lane.b32.xlu0 %v20, 127
  %v248 = vpop.permute.xlu0 %247
  %249 = vrot.lane.b32.xlu0 %v21, 127
  %v250 = vpop.permute.xlu0 %249
  %251 = vrot.lane.b32.xlu0 %v22, 127
  %v252 = vpop.permute.xlu0 %251
  %253 = vrot.lane.b32.xlu0 %v23, 127
  %v254 = vpop.permute.xlu0 %253
  %v255 = vld [vmem:[%s4] sm:$0x1]
  %v257 = vlaneseq
  %v258 = vshrl.u32 %v257, 7
  %v259 = vsub.s32 0, %v258
  %v260 = vrot.slane %v255, %v259
  %v262 = vmul.f32 %v248, %v260
  %v263 = vmul.f32 %v250, %v260
  %v264 = vmul.f32 %v252, %v260
  %v265 = vmul.f32 %v254, %v260
  %s266 = scalar_lea.vmem %s1, 64
  %v267 = vld [vmem:[%s266] sm:$0xff]
  %v268 = vld [vmem:[%s266 + $0x8] sm:$0xff]
  %v269 = vld [vmem:[%s266 + $0x10] sm:$0xff]
  %v270 = vld [vmem:[%s266 + $0x18] sm:$0xff]
  %v272 = vsel %vm52, %v267, 0
  %v275 = vsel %vm52, %v268, 0
  %v278 = vsel %vm52, %v269, 0
  %v281 = vsel %vm52, %v270, 0
  %283 = vmatprep.subr.mxu0 0.0
  %284 = vmatpush1.msra.mxu0 %v262
  %285 = vmatprep.subr.mxu0 0.0
  %286 = vmatpush1.msra.mxu0 %v263
  %287 = vmatprep.subr.mxu0 0.0
  %288 = vmatpush1.msra.mxu0 %v264
  %289 = vmatprep.subr.mxu0 0.0
  %290 = vmatpush1.msra.mxu0 %v265
  %291 = vmatprep.subr.mxu0 0.0
  %292 = vmatpush1.msra.mxu0 0.0
  %293 = vmatprep.subr.mxu0 0.0
  %294 = vmatpush1.msra.mxu0 0.0
  %295 = vmatprep.subr.mxu0 0.0
  %296 = vmatpush1.msra.mxu0 0.0
  %297 = vmatprep.subr.mxu0 0.0
  %298 = vmatpush1.msra.mxu0 0.0
  %299 = vmatprep.subr.mxu0 0.0
  %300 = vmatpush1.msra.mxu0 0.0
  %301 = vmatprep.subr.mxu0 0.0
  %302 = vmatpush1.msra.mxu0 0.0
  %303 = vmatprep.subr.mxu0 0.0
  %304 = vmatpush1.msra.mxu0 0.0
  %305 = vmatprep.subr.mxu0 0.0
  %306 = vmatpush1.msra.mxu0 0.0
  %307 = vmatprep.subr.mxu0 0.0
  %308 = vmatpush1.msra.mxu0 0.0
  %309 = vmatprep.subr.mxu0 0.0
  %310 = vmatpush1.msra.mxu0 0.0
  %311 = vmatprep.subr.mxu0 0.0
  %312 = vmatpush1.msra.mxu0 0.0
  %313 = vmatprep.subr.mxu0 0.0
  %314 = vmatpush1.msra.mxu0 0.0
  %315 = vmatprep.subr.mxu0 0.0
  %316 = vmatpush1.msra.mxu0 0.0
  %317 = vmatprep.subr.mxu0 0.0
  %318 = vmatpush1.msra.mxu0 0.0
  %319 = vmatprep.subr.mxu0 0.0
  %320 = vmatpush1.msra.mxu0 0.0
  %321 = vmatprep.subr.mxu0 0.0
  %322 = vmatpush1.msra.mxu0 0.0
  %323 = vmatprep.subr.mxu0 0.0
  %324 = vmatpush1.msra.mxu0 0.0
  %325 = vmatprep.subr.mxu0 0.0
  %326 = vmatpush1.msra.mxu0 0.0
  %327 = vmatprep.subr.mxu0 0.0
  %328 = vmatpush1.msra.mxu0 0.0
  %329 = vmatprep.subr.mxu0 0.0
  %330 = vmatpush1.msra.mxu0 0.0
  %331 = vmatprep.subr.mxu0 0.0
  %332 = vmatpush1.msra.mxu0 0.0
  %333 = vmatprep.subr.mxu0 0.0
  %334 = vmatpush1.msra.mxu0 0.0
  %335 = vmatprep.subr.mxu0 0.0
  %336 = vmatpush1.msra.mxu0 0.0
  %337 = vmatprep.subr.mxu0 0.0
  %338 = vmatpush1.msra.mxu0 0.0
  %339 = vmatprep.subr.mxu0 0.0
  %340 = vmatpush1.msra.mxu0 0.0
  %341 = vmatprep.subr.mxu0 0.0
  %342 = vmatpush1.msra.mxu0 0.0
  %343 = vmatprep.subr.mxu0 0.0
  %344 = vmatpush1.msra.mxu0 0.0
  %345 = vmatprep.subr.mxu0 0.0
  %346 = vmatpush1.msra.mxu0 0.0
  %347 = vmatprep.mubr.f32.mxu0 0.0
  %348 = vmatmul.mubr.f32.gmra.mrb[0].mxu0 %v272
  %v349 = vpop.f32.mrb[0].mxu0
  %v350 = vadd.f32 0.0, %v349
  %v351 = vpop.f32.mrb[0].mxu0
  %352 = vmatprep.mubr.f32.mxu0 0.0
  %353 = vmatmul.mubr.f32.gmra.mrb[0].mxu0 %v275
  %v354 = vpop.f32.mrb[0].mxu0
  %v355 = vadd.f32 0.0, %v354
  %v356 = vpop.f32.mrb[0].mxu0
  %357 = vmatprep.mubr.f32.mxu0 0.0
  %358 = vmatmul.mubr.f32.gmra.mrb[0].mxu0 %v278
  %v359 = vpop.f32.mrb[0].mxu0
  %v360 = vadd.f32 0.0, %v359
  %v361 = vpop.f32.mrb[0].mxu0
  %362 = vmatprep.mubr.f32.mxu0 0.0
  %363 = vmatmul.mubr.f32.gmra.mrb[0].mxu0 %v281
  %v364 = vpop.f32.mrb[0].mxu0
  %v365 = vadd.f32 0.0, %v364
  %v366 = vpop.f32.mrb[0].mxu0
  %367 = vdwg.mxu0
  %v368 = vadd.f32 %v229, %v350
  %v369 = vadd.f32 %v234, %v355
  %v370 = vadd.f32 %v239, %v360
  %v371 = vadd.f32 %v244, %v365
  %v372 = vld [vmem:[%s2] sm:$0xff]
  %v373 = vld [vmem:[%s2 + $0x8] sm:$0xff]
  %v374 = vld [vmem:[%s2 + $0x10] sm:$0xff]
  %v375 = vld [vmem:[%s2 + $0x18] sm:$0xff]
  %377 = vset.pattern.permute.xlu0 0
  %378 = vperm.xlu0 %377, %v372
  %v379 = vpop.permute.xlu0 %378
  %382 = vset.pattern.permute.xlu0 0
  %383 = vperm.xlu0 %382, %v373
  %v384 = vpop.permute.xlu0 %383
  %387 = vset.pattern.permute.xlu0 0
  %388 = vperm.xlu0 %387, %v374
  %v389 = vpop.permute.xlu0 %388
  %392 = vset.pattern.permute.xlu0 0
  %393 = vperm.xlu0 %392, %v375
  %v394 = vpop.permute.xlu0 %393
  %v396 = vadd.f32 %v368, %v379
  %v397 = vadd.f32 %v369, %v384
  %v398 = vadd.f32 %v370, %v389
  %v399 = vadd.f32 %v371, %v394
  %v400 = vmax.f32 %v396, 0.0
  %v401 = vmax.f32 %v397, 0.0
  %v402 = vmax.f32 %v398, 0.0
  %v403 = vmax.f32 %v399, 0.0
  %404 = vst [vmem:[%s5] sm:$0xff] %v400
  %405 = vst [vmem:[%s5 + $0x8] sm:$0xff] %v401
  %406 = vst [vmem:[%s5 + $0x10] sm:$0xff] %v402
  %407 = vst [vmem:[%s5 + $0x18] sm:$0xff] %v403
  // Predicated region
  $region22: #{encoder_forward.4} parent=0 // pred_check
    _
  $region23: #{encoder_forward.4} parent=0 // pred_check_branch
    %409 = sbr.rel (0) target = $region25
  $region24: #{encoder_forward.4} parent=0 // pred_region
    _
  $region25: #{encoder_forward.4} parent=0 // pred_fallthru
    _
  // Predicated region
  $region26: #{encoder_forward.4} parent=0 // pred_check
    _
  $region27: #{encoder_forward.4} parent=0 // pred_check_branch
    %411 = sbr.rel (0) target = $region29
  $region28: #{encoder_forward.4} parent=0 // pred_region
    _
  $region29: #{encoder_forward.4} parent=0 // pred_fallthru
    _

// kernel: encoder_forward.5
$region0: #{encoder_forward.5}
  #allocation0 [shape = 'u32[]', space=smem, size = 0x4, offset = 0x4, fixed_abs, tag = 'smem constant byte address 0x4 - core index']
  #allocation1 [shape = 'u32[144,128]{1,0:T(1,128)}', space=vmem, size = 0x12000, scoped, tag = 'internal scratch']
  %s0 = inlined_call_operand.vmem [shape: f32[32,128], index: 0, kind: input, shape index: {}]
  %s1 = inlined_call_operand.vmem [shape: f32[32,96], index: 1, kind: input, shape index: {}]
  %s2 = inlined_call_operand.vmem [shape: f32[32,1], index: 2, kind: input, shape index: {}]
  %s3 = inlined_call_operand.vmem [shape: f32[1,128], index: 3, kind: input, shape index: {}]
  %s4 = inlined_call_operand.vmem [shape: f32[1,128], index: 4, kind: input, shape index: {}]
  %s5 = inlined_call_operand.vmem [shape: f32[2,16,96], index: 5, kind: input, shape index: {}]
  %s6 = inlined_call_operand.vmem [shape: f32[2,32,16], index: 6, kind: input, shape index: {}]
  %s7 = inlined_call_operand.vmem [shape: f32[16,32], index: 7, kind: input, shape index: {}]
  %s8 = inlined_call_operand.vmem [shape: f32[16,1], index: 8, kind: input, shape index: {}]
  %s9 = inlined_call_operand.vmem [shape: f32[16,128], index: 9, kind: output, shape index: {}]
  %s10 = sld [smem:[#allocation0]]
  $region46: #{encoder_forward.5} parent=0
    _
  %s12 = ssub.s32 1, %s10
  %s13 = scalar_select 0, %s12, %s10
  // Predicated region
  $region2: #{encoder_forward.5} parent=0 // pred_check
    _
  $region3: #{encoder_forward.5} parent=0 // pred_check_branch
    %15 = sbr.rel (0) target = $region5
  $region4: #{encoder_forward.5} parent=0 // pred_region
    _
  $region5: #{encoder_forward.5} parent=0 // pred_fallthru
    _
  // Predicated region
  $region6: #{encoder_forward.5} parent=0 // pred_check
    _
  $region7: #{encoder_forward.5} parent=0 // pred_check_branch
    %17 = sbr.rel (0) target = $region9
  $region8: #{encoder_forward.5} parent=0 // pred_region
    _
  $region9: #{encoder_forward.5} parent=0 // pred_fallthru
    _
  // Predicated region
  $region10: #{encoder_forward.5} parent=0 // pred_check
    _
  $region11: #{encoder_forward.5} parent=0 // pred_check_branch
    %19 = sbr.rel (0) target = $region13
  $region12: #{encoder_forward.5} parent=0 // pred_region
    _
  $region13: #{encoder_forward.5} parent=0 // pred_fallthru
    _
  // Predicated region
  $region14: #{encoder_forward.5} parent=0 // pred_check
    _
  $region15: #{encoder_forward.5} parent=0 // pred_check_branch
    %21 = sbr.rel (0) target = $region17
  $region16: #{encoder_forward.5} parent=0 // pred_region
    _
  $region17: #{encoder_forward.5} parent=0 // pred_fallthru
    _
  // Predicated region
  $region18: #{encoder_forward.5} parent=0 // pred_check
    _
  $region19: #{encoder_forward.5} parent=0 // pred_check_branch
    %23 = sbr.rel (0) target = $region21
  $region20: #{encoder_forward.5} parent=0 // pred_region
    _
  $region21: #{encoder_forward.5} parent=0 // pred_fallthru
    _
  // Predicated region
  $region22: #{encoder_forward.5} parent=0 // pred_check
    _
  $region23: #{encoder_forward.5} parent=0 // pred_check_branch
    %25 = sbr.rel (0) target = $region25
  $region24: #{encoder_forward.5} parent=0 // pred_region
    _
  $region25: #{encoder_forward.5} parent=0 // pred_fallthru
    _
  // Predicated region
  $region26: #{encoder_forward.5} parent=0 // pred_check
    _
  $region27: #{encoder_forward.5} parent=0 // pred_check_branch
    %27 = sbr.rel (0) target = $region29
  $region28: #{encoder_forward.5} parent=0 // pred_region
    _
  $region29: #{encoder_forward.5} parent=0 // pred_fallthru
    _
  // Predicated region
  $region30: #{encoder_forward.5} parent=0 // pred_check
    _
  $region31: #{encoder_forward.5} parent=0 // pred_check_branch
    %29 = sbr.rel (0) target = $region33
  $region32: #{encoder_forward.5} parent=0 // pred_region
    _
  $region33: #{encoder_forward.5} parent=0 // pred_fallthru
    _
  // Predicated region
  $region34: #{encoder_forward.5} parent=0 // pred_check
    _
  $region35: #{encoder_forward.5} parent=0 // pred_check_branch
    %31 = sbr.rel (0) target = $region37
  $region36: #{encoder_forward.5} parent=0 // pred_region
    _
  $region37: #{encoder_forward.5} parent=0 // pred_fallthru
    _
  %v32 = vld [vmem:[%s3] sm:$0x1]
  %v33 = vld [vmem:[%s4] sm:$0x1]
  %v34 = vld [vmem:[%s0] sm:$0xff]
  %v35 = vld [vmem:[%s0 + $0x8] sm:$0xff]
  %v36 = vld [vmem:[%s0 + $0x10] sm:$0xff]
  %v37 = vld [vmem:[%s0 + $0x18] sm:$0xff]
  %v38 = vld [vmem:[%s1] sm:$0xff]
  %v39 = vld [vmem:[%s1 + $0x8] sm:$0xff]
  %v40 = vld [vmem:[%s1 + $0x10] sm:$0xff]
  %v41 = vld [vmem:[%s1 + $0x18] sm:$0xff]
  %42 = vrot.lane.b32.xlu0 %v34, 1
  %v43 = vpop.permute.xlu0 %42
  %44 = vrot.lane.b32.xlu0 %v35, 1
  %v45 = vpop.permute.xlu0 %44
  %46 = vrot.lane.b32.xlu0 %v36, 1
  %v47 = vpop.permute.xlu0 %46
  %48 = vrot.lane.b32.xlu0 %v37, 1
  %v49 = vpop.permute.xlu0 %48
  %v51 = vlaneseq
  %v52 = vshrl.u32 %v51, 7
  %v53 = vsub.s32 0, %v52
  %v54 = vrot.slane %v32, %v53
  %v56 = vmul.f32 %v43, %v54
  %v57 = vmul.f32 %v45, %v54
  %v58 = vmul.f32 %v47, %v54
  %v59 = vmul.f32 %v49, %v54
  %60 = vrot.lane.b32.xlu0 %v34, 127
  %v61 = vpop.permute.xlu0 %60
  %62 = vrot.lane.b32.xlu0 %v35, 127
  %v63 = vpop.permute.xlu0 %62
  %64 = vrot.lane.b32.xlu0 %v36, 127
  %v65 = vpop.permute.xlu0 %64
  %66 = vrot.lane.b32.xlu0 %v37, 127
  %v67 = vpop.permute.xlu0 %66
  %v69 = vlaneseq
  %v70 = vshrl.u32 %v69, 7
  %v71 = vsub.s32 0, %v70
  %v72 = vrot.slane %v33, %v71
  %v74 = vmul.f32 %v61, %v72
  %v75 = vmul.f32 %v63, %v72
  %v76 = vmul.f32 %v65, %v72
  %v77 = vmul.f32 %v67, %v72
  %v78 = vld [vmem:[%s2] sm:$0xff]
  %v79 = vld [vmem:[%s2 + $0x8] sm:$0xff]
  %v80 = vld [vmem:[%s2 + $0x10] sm:$0xff]
  %v81 = vld [vmem:[%s2 + $0x18] sm:$0xff]
  %83 = vset.pattern.permute.xlu0 0
  %84 = vperm.xlu0 %83, %v78
  %v85 = vpop.permute.xlu0 %84
  %88 = vset.pattern.permute.xlu0 0
  %89 = vperm.xlu0 %88, %v79
  %v90 = vpop.permute.xlu0 %89
  %93 = vset.pattern.permute.xlu0 0
  %94 = vperm.xlu0 %93, %v80
  %v95 = vpop.permute.xlu0 %94
  %98 = vset.pattern.permute.xlu0 0
  %99 = vperm.xlu0 %98, %v81
  %v100 = vpop.permute.xlu0 %99
  %vm102 = vcmask 785408
  %v104 = vsel %vm102, %v38, 0
  %v107 = vsel %vm102, %v39, 0
  %v110 = vsel %vm102, %v40, 0
  %v113 = vsel %vm102, %v41, 0
  %115 = vmatprep.subr.mxu0 0.0
  %116 = vmatpush1.msra.mxu0 %v56
  %117 = vmatprep.subr.mxu0 0.0
  %118 = vmatpush1.msra.mxu0 %v57
  %119 = vmatprep.subr.mxu0 0.0
  %120 = vmatpush1.msra.mxu0 %v58
  %121 = vmatprep.subr.mxu0 0.0
  %122 = vmatpush1.msra.mxu0 %v59
  %123 = vmatprep.subr.mxu0 0.0
  %124 = vmatpush1.msra.mxu0 %v34
  %125 = vmatprep.subr.mxu0 0.0
  %126 = vmatpush1.msra.mxu0 %v35
  %127 = vmatprep.subr.mxu0 0.0
  %128 = vmatpush1.msra.mxu0 %v36
  %129 = vmatprep.subr.mxu0 0.0
  %130 = vmatpush1.msra.mxu0 %v37
  %131 = vmatprep.subr.mxu0 0.0
  %132 = vmatpush1.msra.mxu0 %v74
  %133 = vmatprep.subr.mxu0 0.0
  %134 = vmatpush1.msra.mxu0 %v75
  %135 = vmatprep.subr.mxu0 0.0
  %136 = vmatpush1.msra.mxu0 %v76
  %137 = vmatprep.subr.mxu0 0.0
  %138 = vmatpush1.msra.mxu0 %v77
  %139 = vmatprep.subr.mxu0 0.0
  %140 = vmatpush1.msra.mxu0 0.0
  %141 = vmatprep.subr.mxu0 0.0
  %142 = vmatpush1.msra.mxu0 0.0
  %143 = vmatprep.subr.mxu0 0.0
  %144 = vmatpush1.msra.mxu0 0.0
  %145 = vmatprep.subr.mxu0 0.0
  %146 = vmatpush1.msra.mxu0 0.0
  %147 = vmatprep.subr.mxu0 0.0
  %148 = vmatpush1.msra.mxu0 0.0
  %149 = vmatprep.subr.mxu0 0.0
  %150 = vmatpush1.msra.mxu0 0.0
  %151 = vmatprep.subr.mxu0 0.0
  %152 = vmatpush1.msra.mxu0 0.0
  %153 = vmatprep.subr.mxu0 0.0
  %154 = vmatpush1.msra.mxu0 0.0
  %155 = vmatprep.subr.mxu0 0.0
  %156 = vmatpush1.msra.mxu0 0.0
  %157 = vmatprep.subr.mxu0 0.0
  %158 = vmatpush1.msra.mxu0 0.0
  %159 = vmatprep.subr.mxu0 0.0
  %160 = vmatpush1.msra.mxu0 0.0
  %161 = vmatprep.subr.mxu0 0.0
  %162 = vmatpush1.msra.mxu0 0.0
  %163 = vmatprep.subr.mxu0 0.0
  %164 = vmatpush1.msra.mxu0 0.0
  %165 = vmatprep.subr.mxu0 0.0
  %166 = vmatpush1.msra.mxu0 0.0
  %167 = vmatprep.subr.mxu0 0.0
  %168 = vmatpush1.msra.mxu0 0.0
  %169 = vmatprep.subr.mxu0 0.0
  %170 = vmatpush1.msra.mxu0 0.0
  %171 = vmatprep.subr.mxu0 0.0
  %172 = vmatpush1.msra.mxu0 0.0
  %173 = vmatprep.subr.mxu0 0.0
  %174 = vmatpush1.msra.mxu0 0.0
  %175 = vmatprep.subr.mxu0 0.0
  %176 = vmatpush1.msra.mxu0 0.0
  %177 = vmatprep.subr.mxu0 0.0
  %178 = vmatpush1.msra.mxu0 0.0
  %179 = vmatprep.mubr.f32.mxu0 0.0
  %180 = vmatmul.mubr.f32.gmra.mrb[0].mxu0 %v104
  %v181 = vpop.f32.mrb[0].mxu0
  %v182 = vadd.f32 %v85, %v181
  %v183 = vpop.f32.mrb[0].mxu0
  %184 = vmatprep.mubr.f32.mxu0 0.0
  %185 = vmatmul.mubr.f32.gmra.mrb[0].mxu0 %v107
  %v186 = vpop.f32.mrb[0].mxu0
  %v187 = vadd.f32 %v90, %v186
  %v188 = vpop.f32.mrb[0].mxu0
  %189 = vmatprep.mubr.f32.mxu0 0.0
  %190 = vmatmul.mubr.f32.gmra.mrb[0].mxu0 %v110
  %v191 = vpop.f32.mrb[0].mxu0
  %v192 = vadd.f32 %v95, %v191
  %v193 = vpop.f32.mrb[0].mxu0
  %194 = vmatprep.mubr.f32.mxu0 0.0
  %195 = vmatmul.mubr.f32.gmra.mrb[0].mxu0 %v113
  %v196 = vpop.f32.mrb[0].mxu0
  %v197 = vadd.f32 %v100, %v196
  %v198 = vpop.f32.mrb[0].mxu0
  %199 = vdwg.mxu0
  %v200 = vmax.f32 %v182, 0.0
  %v201 = vmax.f32 %v187, 0.0
  %v202 = vmax.f32 %v192, 0.0
  %v203 = vmax.f32 %v197, 0.0
  %v204 = vld [vmem:[%s5] sm:$0xff]
  %v205 = vld [vmem:[%s5 + $0x8] sm:$0xff]
  %206 = vrot.lane.b32.xlu0 %v200, 1
  %v207 = vpop.permute.xlu0 %206
  %208 = vrot.lane.b32.xlu0 %v201, 1
  %v209 = vpop.permute.xlu0 %208
  %210 = vrot.lane.b32.xlu0 %v202, 1
  %v211 = vpop.permute.xlu0 %210
  %212 = vrot.lane.b32.xlu0 %v203, 1
  %v213 = vpop.permute.xlu0 %212
  %v214 = vmul.f32 %v207, %v54
  %v215 = vmul.f32 %v209, %v54
  %v216 = vmul.f32 %v211, %v54
  %v217 = vmul.f32 %v213, %v54
  %218 = vrot.lane.b32.xlu0 %v200, 127
  %v219 = vpop.permute.xlu0 %218
  %220 = vrot.lane.b32.xlu0 %v201, 127
  %v221 = vpop.permute.xlu0 %220
  %222 = vrot.lane.b32.xlu0 %v202, 127
  %v223 = vpop.permute.xlu0 %222
  %224 = vrot.lane.b32.xlu0 %v203, 127
  %v225 = vpop.permute.xlu0 %224
  %v226 = vmul.f32 %v219, %v72
  %v227 = vmul.f32 %v221, %v72
  %v228 = vmul.f32 %v223, %v72
  %v229 = vmul.f32 %v225, %v72
  %v231 = vsel %vm102, %v204, 0
  %v234 = vsel %vm102, %v205, 0
  %236 = vmatprep.subr.mxu0 0.0
  %237 = vmatpush1.msra.mxu0 %v214
  %238 = vmatprep.subr.mxu0 0.0
  %239 = vmatpush1.msra.mxu0 %v215
  %240 = vmatprep.subr.mxu0 0.0
  %241 = vmatpush1.msra.mxu0 %v216
  %242 = vmatprep.subr.mxu0 0.0
  %243 = vmatpush1.msra.mxu0 %v217
  %244 = vmatprep.subr.mxu0 0.0
  %245 = vmatpush1.msra.mxu0 %v200
  %246 = vmatprep.subr.mxu0 0.0
  %247 = vmatpush1.msra.mxu0 %v201
  %248 = vmatprep.subr.mxu0 0.0
  %249 = vmatpush1.msra.mxu0 %v202
  %250 = vmatprep.subr.mxu0 0.0
  %251 = vmatpush1.msra.mxu0 %v203
  %252 = vmatprep.subr.mxu0 0.0
  %253 = vmatpush1.msra.mxu0 %v226
  %254 = vmatprep.subr.mxu0 0.0
  %255 = vmatpush1.msra.mxu0 %v227
  %256 = vmatprep.subr.mxu0 0.0
  %257 = vmatpush1.msra.mxu0 %v228
  %258 = vmatprep.subr.mxu0 0.0
  %259 = vmatpush1.msra.mxu0 %v229
  %260 = vmatprep.subr.mxu0 0.0
  %261 = vmatpush1.msra.mxu0 0.0
  %262 = vmatprep.subr.mxu0 0.0
  %263 = vmatpush1.msra.mxu0 0.0
  %264 = vmatprep.subr.mxu0 0.0
  %265 = vmatpush1.msra.mxu0 0.0
  %266 = vmatprep.subr.mxu0 0.0
  %267 = vmatpush1.msra.mxu0 0.0
  %268 = vmatprep.subr.mxu0 0.0
  %269 = vmatpush1.msra.mxu0 0.0
  %270 = vmatprep.subr.mxu0 0.0
  %271 = vmatpush1.msra.mxu0 0.0
  %272 = vmatprep.subr.mxu0 0.0
  %273 = vmatpush1.msra.mxu0 0.0
  %274 = vmatprep.subr.mxu0 0.0
  %275 = vmatpush1.msra.mxu0 0.0
  %276 = vmatprep.subr.mxu0 0.0
  %277 = vmatpush1.msra.mxu0 0.0
  %278 = vmatprep.subr.mxu0 0.0
  %279 = vmatpush1.msra.mxu0 0.0
  %280 = vmatprep.subr.mxu0 0.0
  %281 = vmatpush1.msra.mxu0 0.0
  %282 = vmatprep.subr.mxu0 0.0
  %283 = vmatpush1.msra.mxu0 0.0
  %284 = vmatprep.subr.mxu0 0.0
  %285 = vmatpush1.msra.mxu0 0.0
  %286 = vmatprep.subr.mxu0 0.0
  %287 = vmatpush1.msra.mxu0 0.0
  %288 = vmatprep.subr.mxu0 0.0
  %289 = vmatpush1.msra.mxu0 0.0
  %290 = vmatprep.subr.mxu0 0.0
  %291 = vmatpush1.msra.mxu0 0.0
  %292 = vmatprep.subr.mxu0 0.0
  %293 = vmatpush1.msra.mxu0 0.0
  %294 = vmatprep.subr.mxu0 0.0
  %295 = vmatpush1.msra.mxu0 0.0
  %296 = vmatprep.subr.mxu0 0.0
  %297 = vmatpush1.msra.mxu0 0.0
  %298 = vmatprep.subr.mxu0 0.0
  %299 = vmatpush1.msra.mxu0 0.0
  %300 = vmatprep.mubr.f32.mxu0 0.0
  %301 = vmatmul.mubr.f32.gmra.mrb[0].mxu0 %v231
  %v302 = vpop.f32.mrb[0].mxu0
  %v303 = vadd.f32 0.0, %v302
  %v304 = vpop.f32.mrb[0].mxu0
  %305 = vmatprep.mubr.f32.mxu0 0.0
  %306 = vmatmul.mubr.f32.gmra.mrb[0].mxu0 %v234
  %v307 = vpop.f32.mrb[0].mxu0
  %v308 = vadd.f32 0.0, %v307
  %v309 = vpop.f32.mrb[0].mxu0
  %310 = vdwg.mxu0
  %v311 = vmax.f32 %v303, 0.0
  %v312 = vmax.f32 %v308, 0.0
  %v313 = vld [vmem:[%s6] sm:$0xff]
  %v314 = vld [vmem:[%s6 + $0x8] sm:$0xff]
  %v315 = vld [vmem:[%s6 + $0x10] sm:$0xff]
  %v316 = vld [vmem:[%s6 + $0x18] sm:$0xff]
  %vm317 = vcmask 130048
  %v319 = vsel %vm317, %v313, 0
  %v322 = vsel %vm317, %v314, 0
  %v325 = vsel %vm317, %v315, 0
  %v328 = vsel %vm317, %v316, 0
  %330 = vmatprep.subr.mxu0 0.0
  %331 = vmatpush1.msra.mxu0 %v311
  %332 = vmatprep.subr.mxu0 0.0
  %333 = vmatpush1.msra.mxu0 %v312
  %334 = vmatprep.subr.mxu0 0.0
  %335 = vmatpush1.msra.mxu0 0.0
  %336 = vmatprep.subr.mxu0 0.0
  %337 = vmatpush1.msra.mxu0 0.0
  %338 = vmatprep.subr.mxu0 0.0
  %339 = vmatpush1.msra.mxu0 0.0
  %340 = vmatprep.subr.mxu0 0.0
  %341 = vmatpush1.msra.mxu0 0.0
  %342 = vmatprep.subr.mxu0 0.0
  %343 = vmatpush1.msra.mxu0 0.0
  %344 = vmatprep.subr.mxu0 0.0
  %345 = vmatpush1.msra.mxu0 0.0
  %346 = vmatprep.subr.mxu0 0.0
  %347 = vmatpush1.msra.mxu0 0.0
  %348 = vmatprep.subr.mxu0 0.0
  %349 = vmatpush1.msra.mxu0 0.0
  %350 = vmatprep.subr.mxu0 0.0
  %351 = vmatpush1.msra.mxu0 0.0
  %352 = vmatprep.subr.mxu0 0.0
  %353 = vmatpush1.msra.mxu0 0.0
  %354 = vmatprep.subr.mxu0 0.0
  %355 = vmatpush1.msra.mxu0 0.0
  %356 = vmatprep.subr.mxu0 0.0
  %357 = vmatpush1.msra.mxu0 0.0
  %358 = vmatprep.subr.mxu0 0.0
  %359 = vmatpush1.msra.mxu0 0.0
  %360 = vmatprep.subr.mxu0 0.0
  %361 = vmatpush1.msra.mxu0 0.0
  %362 = vmatprep.subr.mxu0 0.0
  %363 = vmatpush1.msra.mxu0 0.0
  %364 = vmatprep.subr.mxu0 0.0
  %365 = vmatpush1.msra.mxu0 0.0
  %366 = vmatprep.subr.mxu0 0.0
  %367 = vmatpush1.msra.mxu0 0.0
  %368 = vmatprep.subr.mxu0 0.0
  %369 = vmatpush1.msra.mxu0 0.0
  %370 = vmatprep.subr.mxu0 0.0
  %371 = vmatpush1.msra.mxu0 0.0
  %372 = vmatprep.subr.mxu0 0.0
  %373 = vmatpush1.msra.mxu0 0.0
  %374 = vmatprep.subr.mxu0 0.0
  %375 = vmatpush1.msra.mxu0 0.0
  %376 = vmatprep.subr.mxu0 0.0
  %377 = vmatpush1.msra.mxu0 0.0
  %378 = vmatprep.subr.mxu0 0.0
  %379 = vmatpush1.msra.mxu0 0.0
  %380 = vmatprep.subr.mxu0 0.0
  %381 = vmatpush1.msra.mxu0 0.0
  %382 = vmatprep.subr.mxu0 0.0
  %383 = vmatpush1.msra.mxu0 0.0
  %384 = vmatprep.subr.mxu0 0.0
  %385 = vmatpush1.msra.mxu0 0.0
  %386 = vmatprep.subr.mxu0 0.0
  %387 = vmatpush1.msra.mxu0 0.0
  %388 = vmatprep.subr.mxu0 0.0
  %389 = vmatpush1.msra.mxu0 0.0
  %390 = vmatprep.subr.mxu0 0.0
  %391 = vmatpush1.msra.mxu0 0.0
  %392 = vmatprep.subr.mxu0 0.0
  %393 = vmatpush1.msra.mxu0 0.0
  %394 = vmatprep.mubr.f32.mxu0 0.0
  %395 = vmatmul.mubr.f32.gmra.mrb[0].mxu0 %v319
  %v396 = vpop.f32.mrb[0].mxu0
  %v397 = vadd.f32 0.0, %v396
  %v398 = vpop.f32.mrb[0].mxu0
  %399 = vmatprep.mubr.f32.mxu0 0.0
  %400 = vmatmul.mubr.f32.gmra.mrb[0].mxu0 %v322
  %v401 = vpop.f32.mrb[0].mxu0
  %v402 = vadd.f32 0.0, %v401
  %v403 = vpop.f32.mrb[0].mxu0
  %404 = vmatprep.mubr.f32.mxu0 0.0
  %405 = vmatmul.mubr.f32.gmra.mrb[0].mxu0 %v325
  %v406 = vpop.f32.mrb[0].mxu0
  %v407 = vadd.f32 0.0, %v406
  %v408 = vpop.f32.mrb[0].mxu0
  %409 = vmatprep.mubr.f32.mxu0 0.0
  %410 = vmatmul.mubr.f32.gmra.mrb[0].mxu0 %v328
  %v411 = vpop.f32.mrb[0].mxu0
  %v412 = vadd.f32 0.0, %v411
  %v413 = vpop.f32.mrb[0].mxu0
  %414 = vdwg.mxu0
  %v415 = vadd.f32 %v182, %v397
  %v416 = vadd.f32 %v187, %v402
  %v417 = vadd.f32 %v192, %v407
  %v418 = vadd.f32 %v197, %v412
  %v419 = vmax.f32 %v415, 0.0
  %v420 = vmax.f32 %v416, 0.0
  %v421 = vmax.f32 %v417, 0.0
  %v422 = vmax.f32 %v418, 0.0
  %s423 = scalar_lea.vmem %s5, 16
  %v424 = vld [vmem:[%s423] sm:$0xff]
  %v425 = vld [vmem:[%s423 + $0x8] sm:$0xff]
  %426 = vrot.lane.b32.xlu0 %v419, 1
  %v427 = vpop.permute.xlu0 %426
  %428 = vrot.lane.b32.xlu0 %v420, 1
  %v429 = vpop.permute.xlu0 %428
  %430 = vrot.lane.b32.xlu0 %v421, 1
  %v431 = vpop.permute.xlu0 %430
  %432 = vrot.lane.b32.xlu0 %v422, 1
  %v433 = vpop.permute.xlu0 %432
  %v434 = vmul.f32 %v427, %v54
  %v435 = vmul.f32 %v429, %v54
  %v436 = vmul.f32 %v431, %v54
  %v437 = vmul.f32 %v433, %v54
  %438 = vrot.lane.b32.xlu0 %v419, 127
  %v439 = vpop.permute.xlu0 %438
  %440 = vrot.lane.b32.xlu0 %v420, 127
  %v441 = vpop.permute.xlu0 %440
  %442 = vrot.lane.b32.xlu0 %v421, 127
  %v443 = vpop.permute.xlu0 %442
  %444 = vrot.lane.b32.xlu0 %v422, 127
  %v445 = vpop.permute.xlu0 %444
  %v446 = vmul.f32 %v439, %v72
  %v447 = vmul.f32 %v441, %v72
  %v448 = vmul.f32 %v443, %v72
  %v449 = vmul.f32 %v445, %v72
  %v451 = vsel %vm102, %v424, 0
  %v454 = vsel %vm102, %v425, 0
  %456 = vmatprep.subr.mxu0 0.0
  %457 = vmatpush1.msra.mxu0 %v434
  %458 = vmatprep.subr.mxu0 0.0
  %459 = vmatpush1.msra.mxu0 %v435
  %460 = vmatprep.subr.mxu0 0.0
  %461 = vmatpush1.msra.mxu0 %v436
  %462 = vmatprep.subr.mxu0 0.0
  %463 = vmatpush1.msra.mxu0 %v437
  %464 = vmatprep.subr.mxu0 0.0
  %465 = vmatpush1.msra.mxu0 %v419
  %466 = vmatprep.subr.mxu0 0.0
  %467 = vmatpush1.msra.mxu0 %v420
  %468 = vmatprep.subr.mxu0 0.0
  %469 = vmatpush1.msra.mxu0 %v421
  %470 = vmatprep.subr.mxu0 0.0
  %471 = vmatpush1.msra.mxu0 %v422
  %472 = vmatprep.subr.mxu0 0.0
  %473 = vmatpush1.msra.mxu0 %v446
  %474 = vmatprep.subr.mxu0 0.0
  %475 = vmatpush1.msra.mxu0 %v447
  %476 = vmatprep.subr.mxu0 0.0
  %477 = vmatpush1.msra.mxu0 %v448
  %478 = vmatprep.subr.mxu0 0.0
  %479 = vmatpush1.msra.mxu0 %v449
  %480 = vmatprep.subr.mxu0 0.0
  %481 = vmatpush1.msra.mxu0 0.0
  %482 = vmatprep.subr.mxu0 0.0
  %483 = vmatpush1.msra.mxu0 0.0
  %484 = vmatprep.subr.mxu0 0.0
  %485 = vmatpush1.msra.mxu0 0.0
  %486 = vmatprep.subr.mxu0 0.0
  %487 = vmatpush1.msra.mxu0 0.0
  %488 = vmatprep.subr.mxu0 0.0
  %489 = vmatpush1.msra.mxu0 0.0
  %490 = vmatprep.subr.mxu0 0.0
  %491 = vmatpush1.msra.mxu0 0.0
  %492 = vmatprep.subr.mxu0 0.0
  %493 = vmatpush1.msra.mxu0 0.0
  %494 = vmatprep.subr.mxu0 0.0
  %495 = vmatpush1.msra.mxu0 0.0
  %496 = vmatprep.subr.mxu0 0.0
  %497 = vmatpush1.msra.mxu0 0.0
  %498 = vmatprep.subr.mxu0 0.0
  %499 = vmatpush1.msra.mxu0 0.0
  %500 = vmatprep.subr.mxu0 0.0
  %501 = vmatpush1.msra.mxu0 0.0
  %502 = vmatprep.subr.mxu0 0.0
  %503 = vmatpush1.msra.mxu0 0.0
  %504 = vmatprep.subr.mxu0 0.0
  %505 = vmatpush1.msra.mxu0 0.0
  %506 = vmatprep.subr.mxu0 0.0
  %507 = vmatpush1.msra.mxu0 0.0
  %508 = vmatprep.subr.mxu0 0.0
  %509 = vmatpush1.msra.mxu0 0.0
  %510 = vmatprep.subr.mxu0 0.0
  %511 = vmatpush1.msra.mxu0 0.0
  %512 = vmatprep.subr.mxu0 0.0
  %513 = vmatpush1.msra.mxu0 0.0
  %514 = vmatprep.subr.mxu0 0.0
  %515 = vmatpush1.msra.mxu0 0.0
  %516 = vmatprep.subr.mxu0 0.0
  %517 = vmatpush1.msra.mxu0 0.0
  %518 = vmatprep.subr.mxu0 0.0
  %519 = vmatpush1.msra.mxu0 0.0
  %520 = vmatprep.mubr.f32.mxu0 0.0
  %521 = vmatmul.mubr.f32.gmra.mrb[0].mxu0 %v451
  %v522 = vpop.f32.mrb[0].mxu0
  %v523 = vadd.f32 0.0, %v522
  %v524 = vpop.f32.mrb[0].mxu0
  %525 = vmatprep.mubr.f32.mxu0 0.0
  %526 = vmatmul.mubr.f32.gmra.mrb[0].mxu0 %v454
  %v527 = vpop.f32.mrb[0].mxu0
  %v528 = vadd.f32 0.0, %v527
  %v529 = vpop.f32.mrb[0].mxu0
  %530 = vdwg.mxu0
  %v531 = vmax.f32 %v523, 0.0
  %v532 = vmax.f32 %v528, 0.0
  %s533 = scalar_lea.vmem %s6, 32
  %v534 = vld [vmem:[%s533] sm:$0xff]
  %v535 = vld [vmem:[%s533 + $0x8] sm:$0xff]
  %v536 = vld [vmem:[%s533 + $0x10] sm:$0xff]
  %v537 = vld [vmem:[%s533 + $0x18] sm:$0xff]
  %v539 = vsel %vm317, %v534, 0
  %v542 = vsel %vm317, %v535, 0
  %v545 = vsel %vm317, %v536, 0
  %v548 = vsel %vm317, %v537, 0
  %550 = vmatprep.subr.mxu0 0.0
  %551 = vmatpush1.msra.mxu0 %v531
  %552 = vmatprep.subr.mxu0 0.0
  %553 = vmatpush1.msra.mxu0 %v532
  %554 = vmatprep.subr.mxu0 0.0
  %555 = vmatpush1.msra.mxu0 0.0
  %556 = vmatprep.subr.mxu0 0.0
  %557 = vmatpush1.msra.mxu0 0.0
  %558 = vmatprep.subr.mxu0 0.0
  %559 = vmatpush1.msra.mxu0 0.0
  %560 = vmatprep.subr.mxu0 0.0
  %561 = vmatpush1.msra.mxu0 0.0
  %562 = vmatprep.subr.mxu0 0.0
  %563 = vmatpush1.msra.mxu0 0.0
  %564 = vmatprep.subr.mxu0 0.0
  %565 = vmatpush1.msra.mxu0 0.0
  %566 = vmatprep.subr.mxu0 0.0
  %567 = vmatpush1.msra.mxu0 0.0
  %568 = vmatprep.subr.mxu0 0.0
  %569 = vmatpush1.msra.mxu0 0.0
  %570 = vmatprep.subr.mxu0 0.0
  %571 = vmatpush1.msra.mxu0 0.0
  %572 = vmatprep.subr.mxu0 0.0
  %573 = vmatpush1.msra.mxu0 0.0
  %574 = vmatprep.subr.mxu0 0.0
  %575 = vmatpush1.msra.mxu0 0.0
  %576 = vmatprep.subr.mxu0 0.0
  %577 = vmatpush1.msra.mxu0 0.0
  %578 = vmatprep.subr.mxu0 0.0
  %579 = vmatpush1.msra.mxu0 0.0
  %580 = vmatprep.subr.mxu0 0.0
  %581 = vmatpush1.msra.mxu0 0.0
  %582 = vmatprep.subr.mxu0 0.0
  %583 = vmatpush1.msra.mxu0 0.0
  %584 = vmatprep.subr.mxu0 0.0
  %585 = vmatpush1.msra.mxu0 0.0
  %586 = vmatprep.subr.mxu0 0.0
  %587 = vmatpush1.msra.mxu0 0.0
  %588 = vmatprep.subr.mxu0 0.0
  %589 = vmatpush1.msra.mxu0 0.0
  %590 = vmatprep.subr.mxu0 0.0
  %591 = vmatpush1.msra.mxu0 0.0
  %592 = vmatprep.subr.mxu0 0.0
  %593 = vmatpush1.msra.mxu0 0.0
  %594 = vmatprep.subr.mxu0 0.0
  %595 = vmatpush1.msra.mxu0 0.0
  %596 = vmatprep.subr.mxu0 0.0
  %597 = vmatpush1.msra.mxu0 0.0
  %598 = vmatprep.subr.mxu0 0.0
  %599 = vmatpush1.msra.mxu0 0.0
  %600 = vmatprep.subr.mxu0 0.0
  %601 = vmatpush1.msra.mxu0 0.0
  %602 = vmatprep.subr.mxu0 0.0
  %603 = vmatpush1.msra.mxu0 0.0
  %604 = vmatprep.subr.mxu0 0.0
  %605 = vmatpush1.msra.mxu0 0.0
  %606 = vmatprep.subr.mxu0 0.0
  %607 = vmatpush1.msra.mxu0 0.0
  %608 = vmatprep.subr.mxu0 0.0
  %609 = vmatpush1.msra.mxu0 0.0
  %610 = vmatprep.subr.mxu0 0.0
  %611 = vmatpush1.msra.mxu0 0.0
  %612 = vmatprep.subr.mxu0 0.0
  %613 = vmatpush1.msra.mxu0 0.0
  %614 = vmatprep.mubr.f32.mxu0 0.0
  %615 = vmatmul.mubr.f32.gmra.mrb[0].mxu0 %v539
  %v616 = vpop.f32.mrb[0].mxu0
  %v617 = vadd.f32 0.0, %v616
  %v618 = vpop.f32.mrb[0].mxu0
  %619 = vmatprep.mubr.f32.mxu0 0.0
  %620 = vmatmul.mubr.f32.gmra.mrb[0].mxu0 %v542
  %v621 = vpop.f32.mrb[0].mxu0
  %v622 = vadd.f32 0.0, %v621
  %v623 = vpop.f32.mrb[0].mxu0
  %624 = vmatprep.mubr.f32.mxu0 0.0
  %625 = vmatmul.mubr.f32.gmra.mrb[0].mxu0 %v545
  %v626 = vpop.f32.mrb[0].mxu0
  %v627 = vadd.f32 0.0, %v626
  %v628 = vpop.f32.mrb[0].mxu0
  %629 = vmatprep.mubr.f32.mxu0 0.0
  %630 = vmatmul.mubr.f32.gmra.mrb[0].mxu0 %v548
  %v631 = vpop.f32.mrb[0].mxu0
  %v632 = vadd.f32 0.0, %v631
  %v633 = vpop.f32.mrb[0].mxu0
  %634 = vdwg.mxu0
  %v635 = vadd.f32 %v415, %v617
  %v636 = vadd.f32 %v416, %v622
  %v637 = vadd.f32 %v417, %v627
  %v638 = vadd.f32 %v418, %v632
  %v639 = vmax.f32 %v635, 0.0
  %v640 = vmax.f32 %v636, 0.0
  %v641 = vmax.f32 %v637, 0.0
  %v642 = vmax.f32 %v638, 0.0
  %v643 = vld [vmem:[%s7] sm:$0xff]
  %v644 = vld [vmem:[%s7 + $0x8] sm:$0xff]
  %v645 = vld [vmem:[%s8] sm:$0xff]
  %v646 = vld [vmem:[%s8 + $0x8] sm:$0xff]
  %648 = vset.pattern.permute.xlu0 0
  %649 = vperm.xlu0 %648, %v645
  %v650 = vpop.permute.xlu0 %649
  %653 = vset.pattern.permute.xlu0 0
  %654 = vperm.xlu0 %653, %v646
  %v655 = vpop.permute.xlu0 %654
  %vm657 = vcmask 261120
  %v659 = vsel %vm657, %v643, 0
  %v662 = vsel %vm657, %v644, 0
  %664 = vmatprep.subr.mxu0 0.0
  %665 = vmatpush1.msra.mxu0 %v639
  %666 = vmatprep.subr.mxu0 0.0
  %667 = vmatpush1.msra.mxu0 %v640
  %668 = vmatprep.subr.mxu0 0.0
  %669 = vmatpush1.msra.mxu0 %v641
  %670 = vmatprep.subr.mxu0 0.0
  %671 = vmatpush1.msra.mxu0 %v642
  %672 = vmatprep.subr.mxu0 0.0
  %673 = vmatpush1.msra.mxu0 0.0
  %674 = vmatprep.subr.mxu0 0.0
  %675 = vmatpush1.msra.mxu0 0.0
  %676 = vmatprep.subr.mxu0 0.0
  %677 = vmatpush1.msra.mxu0 0.0
  %678 = vmatprep.subr.mxu0 0.0
  %679 = vmatpush1.msra.mxu0 0.0
  %680 = vmatprep.subr.mxu0 0.0
  %681 = vmatpush1.msra.mxu0 0.0
  %682 = vmatprep.subr.mxu0 0.0
  %683 = vmatpush1.msra.mxu0 0.0
  %684 = vmatprep.subr.mxu0 0.0
  %685 = vmatpush1.msra.mxu0 0.0
  %686 = vmatprep.subr.mxu0 0.0
  %687 = vmatpush1.msra.mxu0 0.0
  %688 = vmatprep.subr.mxu0 0.0
  %689 = vmatpush1.msra.mxu0 0.0
  %690 = vmatprep.subr.mxu0 0.0
  %691 = vmatpush1.msra.mxu0 0.0
  %692 = vmatprep.subr.mxu0 0.0
  %693 = vmatpush1.msra.mxu0 0.0
  %694 = vmatprep.subr.mxu0 0.0
  %695 = vmatpush1.msra.mxu0 0.0
  %696 = vmatprep.subr.mxu0 0.0
  %697 = vmatpush1.msra.mxu0 0.0
  %698 = vmatprep.subr.mxu0 0.0
  %699 = vmatpush1.msra.mxu0 0.0
  %700 = vmatprep.subr.mxu0 0.0
  %701 = vmatpush1.msra.mxu0 0.0
  %702 = vmatprep.subr.mxu0 0.0
  %703 = vmatpush1.msra.mxu0 0.0
  %704 = vmatprep.subr.mxu0 0.0
  %705 = vmatpush1.msra.mxu0 0.0
  %706 = vmatprep.subr.mxu0 0.0
  %707 = vmatpush1.msra.mxu0 0.0
  %708 = vmatprep.subr.mxu0 0.0
  %709 = vmatpush1.msra.mxu0 0.0
  %710 = vmatprep.subr.mxu0 0.0
  %711 = vmatpush1.msra.mxu0 0.0
  %712 = vmatprep.subr.mxu0 0.0
  %713 = vmatpush1.msra.mxu0 0.0
  %714 = vmatprep.subr.mxu0 0.0
  %715 = vmatpush1.msra.mxu0 0.0
  %716 = vmatprep.subr.mxu0 0.0
  %717 = vmatpush1.msra.mxu0 0.0
  %718 = vmatprep.subr.mxu0 0.0
  %719 = vmatpush1.msra.mxu0 0.0
  %720 = vmatprep.subr.mxu0 0.0
  %721 = vmatpush1.msra.mxu0 0.0
  %722 = vmatprep.subr.mxu0 0.0
  %723 = vmatpush1.msra.mxu0 0.0
  %724 = vmatprep.subr.mxu0 0.0
  %725 = vmatpush1.msra.mxu0 0.0
  %726 = vmatprep.subr.mxu0 0.0
  %727 = vmatpush1.msra.mxu0 0.0
  %728 = vmatprep.mubr.f32.mxu0 0.0
  %729 = vmatmul.mubr.f32.gmra.mrb[0].mxu0 %v659
  %v730 = vpop.f32.mrb[0].mxu0
  %v731 = vadd.f32 %v650, %v730
  %v732 = vpop.f32.mrb[0].mxu0
  %733 = vmatprep.mubr.f32.mxu0 0.0
  %734 = vmatmul.mubr.f32.gmra.mrb[0].mxu0 %v662
  %v735 = vpop.f32.mrb[0].mxu0
  %v736 = vadd.f32 %v655, %v735
  %v737 = vpop.f32.mrb[0].mxu0
  %738 = vdwg.mxu0
  %739 = vst [vmem:[%s9] sm:$0xff] %v731
  %740 = vst [vmem:[%s9 + $0x8] sm:$0xff] %v736
  // Predicated region
  $region38: #{encoder_forward.5} parent=0 // pred_check
    _
  $region39: #{encoder_forward.5} parent=0 // pred_check_branch
    %742 = sbr.rel (0) target = $region41
  $region40: #{encoder_forward.5} parent=0 // pred_region
    _
  $region41: #{encoder_forward.5} parent=0 // pred_fallthru
    _
  // Predicated region
  $region42: #{encoder_forward.5} parent=0 // pred_check
    _
  $region43: #{encoder_forward.5} parent=0 // pred_check_branch
    %744 = sbr.rel (0) target = $region45
  $region44: #{encoder_forward.5} parent=0 // pred_region
    _
  $region45: #{encoder_forward.5} parent=0 // pred_fallthru
    _

</llo_original>
